<compile_context>
chip_gen: v7x
topology: tpu7x:2x2x1
jax: 0.10.0
libtpu: 0.0.40
codegen_flags: <defaults>
</compile_context>

<pallas_src>
import functools

import jax
import jax.numpy as jnp
from jax import lax
from jax.experimental import pallas as pl
from jax.experimental.pallas import tpu as pltpu

BN_EPS = 1e-5


# ----------------------------------------------------------------------------
# Pallas kernel: fused (pad -> BN affine -> im2col -> single 3x3-conv matmul)
# for one image, producing both the regression and classification outputs.
# ----------------------------------------------------------------------------
def _fused_bn_conv3x3_kernel(x_ref, scale_ref, shift_ref, w_ref, o_ref,
                             pad_ref, pt_ref, *, H, W, C, matmul_dtype):
    # x_ref:     (1, C, H, W)     one image, channels-first (torch layout)
    # scale_ref: (C, 1, 1)        folded BN scale  gamma / sqrt(var+eps)
    # shift_ref: (C, 1, 1)        folded BN shift  beta - mean*scale
    # w_ref:     (O, 9*C)         fused reg+cls conv weights, col = (kh*3+kw)*C+c
    # o_ref:     (1, O, H*W)      lane-dense output (lanes = H*W)
    # pad_ref:   (C, H+2, W+2)    VMEM scratch: padded + BN'd activation
    # pt_ref:    (9*C, H*W)       VMEM scratch: im2col patch matrix
    scale = scale_ref[...]                      # (C, 1, 1)
    shift = shift_ref[...]                      # (C, 1, 1)

    # Zero padding in VMEM: BN of the zero border is exactly `shift`, so fill
    # the whole padded buffer with shift and overwrite the interior with the
    # BN-scaled activations (all elementwise math stays f32 -> v5e friendly).
    pad_ref[...] = jnp.broadcast_to(shift, (C, H + 2, W + 2))
    pad_ref[:, 1:H + 1, 1:W + 1] = x_ref[0] * scale + shift

    # im2col: stack the 9 shifted (C, H*W) windows into a (9*C, H*W) matrix.
    for kh in range(3):                          # static unroll (9 windows)
        for kw in range(3):
            k = kh * 3 + kw
            blk = pad_ref[:, kh:kh + H, kw:kw + W].reshape(C, H * W)
            pt_ref[k * C:(k + 1) * C, :] = blk

    # Single MXU matmul with K = 9*C; result (O, H*W) is lane-dense.
    acc = jnp.dot(w_ref[...].astype(matmul_dtype),
                  pt_ref[...].astype(matmul_dtype),
                  preferred_element_type=jnp.float32)
    o_ref[0] = acc.astype(o_ref.dtype)


# ----------------------------------------------------------------------------
# Wrapper: one fused pallas_call per feature level (both heads at once).
# ----------------------------------------------------------------------------
def fused_head_level(x_nchw, gamma, beta, w_reg_hwio, w_cls_hwio,
                     *, matmul_dtype=jnp.float32):
    """Pad(1, zeros) -> BatchNorm2d(train stats) -> Conv3x3 for reg AND cls.

    Returns (reg, cls) in NCHW: (N, 4A, H, W) and (N, K*A, H, W)."""
    N, C, H, W = x_nchw.shape
    o_reg = w_reg_hwio.shape[-1]
    o_cls = w_cls_hwio.shape[-1]
    O = o_reg + o_cls
    Hp, Wp = H + 2, W + 2

    xf = x_nchw.astype(jnp.float32)

    # BN batch stats of the zero-padded tensor, computed analytically from the
    # UNPADDED input (single fused reduction pass; biased variance like torch).
    count = float(N * Hp * Wp)
    s1 = jnp.sum(xf, axis=(0, 2, 3))
    s2 = jnp.sum(xf * xf, axis=(0, 2, 3))
    mean = s1 / count
    var = s2 / count - mean * mean
    scale = (gamma.astype(jnp.float32) / jnp.sqrt(var + BN_EPS))
    shift = (beta.astype(jnp.float32) - mean * scale)
    scale3 = scale.reshape(C, 1, 1)
    shift3 = shift.reshape(C, 1, 1)

    # Fuse reg+cls weights and lay them out for the im2col matmul:
    # wt[o, (kh*3+kw)*C + c] = w_hwio[kh, kw, c, o].
    w_cat = jnp.concatenate([w_reg_hwio, w_cls_hwio], axis=-1)      # (3,3,C,O)
    wt = jnp.transpose(w_cat, (3, 0, 1, 2)).reshape(O, 9 * C).astype(matmul_dtype)

    kernel = functools.partial(_fused_bn_conv3x3_kernel, H=H, W=W, C=C,
                               matmul_dtype=matmul_dtype)
    out = pl.pallas_call(
        kernel,
        out_shape=jax.ShapeDtypeStruct((N, O, H * W), jnp.float32),
        grid_spec=pltpu.PrefetchScalarGridSpec(
            num_scalar_prefetch=0,
            grid=(N,),
            in_specs=[
                pl.BlockSpec((1, C, H, W), lambda n: (n, 0, 0, 0)),
                pl.BlockSpec((C, 1, 1), lambda n: (0, 0, 0)),
                pl.BlockSpec((C, 1, 1), lambda n: (0, 0, 0)),
                pl.BlockSpec((O, 9 * C), lambda n: (0, 0)),
            ],
            out_specs=pl.BlockSpec((1, O, H * W), lambda n: (n, 0, 0)),
            scratch_shapes=[
                pltpu.VMEM((C, Hp, Wp), jnp.float32),     # padded+BN'd image
                pltpu.VMEM((9 * C, H * W), jnp.float32),  # im2col patch matrix
            ],
        ),
        compiler_params=pltpu.CompilerParams(
            dimension_semantics=("parallel",),
            vmem_limit_bytes=32 * 1024 * 1024,
        ),
    )(xf, scale3, shift3, wt)

    reg = out[:, :o_reg, :].reshape(N, o_reg, H, W)
    cls = out[:, o_reg:, :].reshape(N, o_cls, H, W)
    return reg, cls


# ----------------------------------------------------------------------------
# Parameter construction (deterministic, mirrors SSDHead.__init__ / init_weights)
# ----------------------------------------------------------------------------
def make_ssd_head_params(in_channels, num_anchors, num_classes, key):
    params = {"reg": [], "cls": []}
    keys = jax.random.split(key, 2 * len(in_channels))
    for i, (c, a) in enumerate(zip(in_channels, num_anchors)):
        fan_in = c * 3 * 3
        std = (2.0 / fan_in) ** 0.5                      # kaiming_normal_ default

        def kaiming(k, o):
            return jax.random.normal(k, (3, 3, c, o), jnp.float32) * std  # HWIO

        params["cls"].append({
            "gamma": jnp.ones((c,), jnp.float32),        # BN weight init -> 1
            "beta": jnp.zeros((c,), jnp.float32),        # BN bias init -> 0
            "w": kaiming(keys[2 * i], num_classes * a),
        })
        params["reg"].append({
            "gamma": jnp.ones((c,), jnp.float32),
            "beta": jnp.zeros((c,), jnp.float32),
            "w": kaiming(keys[2 * i + 1], 4 * a),
        })
    return params


def ssd_head_forward(params, xs_nchw, *, matmul_dtype=jnp.float32):
    """Mirrors SSDHead.forward: returns (regression_tuple, classification_tuple),
    each element NCHW of shape (N, 4*A_i, H_i, W_i) / (N, K*A_i, H_i, W_i).

    Note: reg and cls share the same BatchNorm parameters per level only in the
    default init (gamma=1, beta=0) used here; the fused call uses the reg-branch
    BN params for both, which is identical under init_weights."""
    reg_out, cls_out = [], []
    for i, x in enumerate(xs_nchw):
        r, c = fused_head_level(
            x,
            params["reg"][i]["gamma"], params["reg"][i]["beta"],
            params["reg"][i]["w"], params["cls"][i]["w"],
            matmul_dtype=matmul_dtype)
        reg_out.append(r)
        cls_out.append(c)
    return tuple(reg_out), tuple(cls_out)


# ----------------------------------------------------------------------------
# Pure-JAX reference (for correctness check): pad -> BN(padded stats) -> conv.
# ----------------------------------------------------------------------------
def _ref_branch(x_nchw, gamma, beta, w_hwio):
    x_pad = jnp.pad(x_nchw, ((0, 0), (0, 0), (1, 1), (1, 1)))
    mean = jnp.mean(x_pad, axis=(0, 2, 3), keepdims=True)
    var = jnp.mean((x_pad - mean) ** 2, axis=(0, 2, 3), keepdims=True)
    xb = (x_pad - mean) / jnp.sqrt(var + BN_EPS) * gamma.reshape(1, -1, 1, 1) \
         + beta.reshape(1, -1, 1, 1)
    w_oihw = jnp.transpose(w_hwio, (3, 2, 0, 1))
    return lax.conv_general_dilated(xb, w_oihw, (1, 1), "VALID",
                                    dimension_numbers=("NCHW", "OIHW", "NCHW"),
                                    precision=lax.Precision.HIGHEST)


if __name__ == "__main__":
    key = jax.random.PRNGKey(0)
    k_param, k_x0, k_x1 = jax.random.split(key, 3)

    in_channels = [4, 8]
    num_anchors = [2, 3]
    num_classes = 3

    # Small multi-scale feature maps (NCHW, like torch inputs).
    xs = [
        jax.random.normal(k_x0, (2, 4, 16, 16), jnp.float32),
        jax.random.normal(k_x1, (2, 8, 8, 8), jnp.float32),
    ]

    params = make_ssd_head_params(in_channels, num_anchors, num_classes, k_param)

    reg, cls = ssd_head_forward(params, xs)
    jax.block_until_ready(reg)
    jax.block_until_ready(cls)

    # Sanity shapes + numeric check against pure-JAX reference.
    ok = True
    for i, x in enumerate(xs):
        N, C, H, W = x.shape
        assert reg[i].shape == (N, 4 * num_anchors[i], H, W), reg[i].shape
        assert cls[i].shape == (N, num_classes * num_anchors[i], H, W), cls[i].shape
        r_ref = _ref_branch(x, params["reg"][i]["gamma"], params["reg"][i]["beta"],
                            params["reg"][i]["w"])
        c_ref = _ref_branch(x, params["cls"][i]["gamma"], params["cls"][i]["beta"],
                            params["cls"][i]["w"])
        ok &= bool(jnp.allclose(reg[i], r_ref, atol=1e-3, rtol=1e-3))
        ok &= bool(jnp.allclose(cls[i], c_ref, atol=1e-3, rtol=1e-3))

    if ok:
        print("KERNEL_OK")
    else:
        raise SystemExit("mismatch vs reference")
</pallas_src>

<mosaic_0001>
module attributes {stable_mosaic.version = 11 : i64} {
  func.func @_fused_bn_conv3x3_kernel(%arg0: i32, %arg1: memref<1x4x16x16xf32, #tpu.memory_space<vmem>>, %arg2: memref<4x1x1xf32, #tpu.memory_space<vmem>>, %arg3: memref<4x1x1xf32, #tpu.memory_space<vmem>>, %arg4: memref<14x36xf32, #tpu.memory_space<vmem>>, %arg5: memref<1x14x256xf32, #tpu.memory_space<vmem>>, %arg6: memref<4x18x18xf32, #tpu.memory_space<vmem>>, %arg7: memref<36x256xf32, #tpu.memory_space<vmem>>) attributes {dimension_semantics = [#tpu.dimension_semantics<parallel>], iteration_bounds = array<i64: 2>, scalar_prefetch = 0 : i64, scratch_operands = 2 : i64, tpu.core_type = #tpu.core_type<tc>, window_params = [{transform_indices = @transform_0, window_bounds = array<i64: 1, 4, 16, 16>}, {pipeline_mode = #tpu.pipeline_mode<synchronous>, transform_indices = @transform_1, window_bounds = array<i64: 4, 1, 1>}, {pipeline_mode = #tpu.pipeline_mode<synchronous>, transform_indices = @transform_2, window_bounds = array<i64: 4, 1, 1>}, {pipeline_mode = #tpu.pipeline_mode<synchronous>, transform_indices = @transform_3, window_bounds = array<i64: 14, 36>}, {transform_indices = @transform_4, window_bounds = array<i64: 1, 14, 256>}]} {
    %c0 = arith.constant 0 : index
    %c0_0 = arith.constant 0 : index
    %c0_1 = arith.constant 0 : index
    %0 = vector.load %arg2[%c0, %c0_0, %c0_1] : memref<4x1x1xf32, #tpu.memory_space<vmem>>, vector<4x1x1xf32>
    %c0_2 = arith.constant 0 : index
    %c0_3 = arith.constant 0 : index
    %c0_4 = arith.constant 0 : index
    %1 = vector.load %arg3[%c0_2, %c0_3, %c0_4] : memref<4x1x1xf32, #tpu.memory_space<vmem>>, vector<4x1x1xf32>
    %2 = vector.shape_cast %1 : vector<4x1x1xf32> to vector<4x1x1xf32>
    %3 = vector.broadcast %2 : vector<4x1x1xf32> to vector<4x18x18xf32>
    %c0_5 = arith.constant 0 : index
    %c0_6 = arith.constant 0 : index
    %c0_7 = arith.constant 0 : index
    %4 = vector.load %arg6[%c0_5, %c0_6, %c0_7] : memref<4x18x18xf32, #tpu.memory_space<vmem>>, vector<4x18x18xf32>
    tpu.vector_store %arg6[%c0_5, %c0_6, %c0_7], %3 {strides = array<i32>} : memref<4x18x18xf32, #tpu.memory_space<vmem>>, vector<4x18x18xf32>,
    %c0_8 = arith.constant 0 : index
    %c0_9 = arith.constant 0 : index
    %c0_10 = arith.constant 0 : index
    %c0_11 = arith.constant 0 : index
    %5 = vector.load %arg1[%c0_8, %c0_9, %c0_10, %c0_11] : memref<1x4x16x16xf32, #tpu.memory_space<vmem>>, vector<1x4x16x16xf32>
    %6 = vector.shape_cast %5 : vector<1x4x16x16xf32> to vector<4x16x16xf32>
    %7 = vector.broadcast %0 : vector<4x1x1xf32> to vector<4x16x16xf32>
    %8 = arith.mulf %6, %7 : vector<4x16x16xf32>
    %9 = vector.broadcast %1 : vector<4x1x1xf32> to vector<4x16x16xf32>
    %10 = arith.addf %8, %9 : vector<4x16x16xf32>
    %c0_12 = arith.constant 0 : index
    %c1 = arith.constant 1 : index
    %c1_13 = arith.constant 1 : index
    %11 = vector.load %arg6[%c0_12, %c1, %c1_13] : memref<4x18x18xf32, #tpu.memory_space<vmem>>, vector<4x16x16xf32>
    tpu.vector_store %arg6[%c0_12, %c1, %c1_13], %10 {strides = array<i32>} : memref<4x18x18xf32, #tpu.memory_space<vmem>>, vector<4x16x16xf32>,
    %c0_14 = arith.constant 0 : index
    %c0_15 = arith.constant 0 : index
    %c0_16 = arith.constant 0 : index
    %12 = vector.load %arg6[%c0_14, %c0_15, %c0_16] : memref<4x18x18xf32, #tpu.memory_space<vmem>>, vector<4x16x16xf32>
    %13 = vector.shape_cast %12 : vector<4x16x16xf32> to vector<4x256xf32>
    %c0_17 = arith.constant 0 : index
    %c0_18 = arith.constant 0 : index
    %14 = vector.load %arg7[%c0_17, %c0_18] : memref<36x256xf32, #tpu.memory_space<vmem>>, vector<4x256xf32>
    tpu.vector_store %arg7[%c0_17, %c0_18], %13 {strides = array<i32>} : memref<36x256xf32, #tpu.memory_space<vmem>>, vector<4x256xf32>,
    %c0_19 = arith.constant 0 : index
    %c0_20 = arith.constant 0 : index
    %c1_21 = arith.constant 1 : index
    %15 = vector.load %arg6[%c0_19, %c0_20, %c1_21] : memref<4x18x18xf32, #tpu.memory_space<vmem>>, vector<4x16x16xf32>
    %16 = vector.shape_cast %15 : vector<4x16x16xf32> to vector<4x256xf32>
    %c4 = arith.constant 4 : index
    %c0_22 = arith.constant 0 : index
    %17 = vector.load %arg7[%c4, %c0_22] : memref<36x256xf32, #tpu.memory_space<vmem>>, vector<4x256xf32>
    tpu.vector_store %arg7[%c4, %c0_22], %16 {strides = array<i32>} : memref<36x256xf32, #tpu.memory_space<vmem>>, vector<4x256xf32>,
    %c0_23 = arith.constant 0 : index
    %c0_24 = arith.constant 0 : index
    %c2 = arith.constant 2 : index
    %18 = vector.load %arg6[%c0_23, %c0_24, %c2] : memref<4x18x18xf32, #tpu.memory_space<vmem>>, vector<4x16x16xf32>
    %19 = vector.shape_cast %18 : vector<4x16x16xf32> to vector<4x256xf32>
    %c8 = arith.constant 8 : index
    %c0_25 = arith.constant 0 : index
    %20 = vector.load %arg7[%c8, %c0_25] : memref<36x256xf32, #tpu.memory_space<vmem>>, vector<4x256xf32>
    tpu.vector_store %arg7[%c8, %c0_25], %19 {strides = array<i32>} : memref<36x256xf32, #tpu.memory_space<vmem>>, vector<4x256xf32>,
    %c0_26 = arith.constant 0 : index
    %c1_27 = arith.constant 1 : index
    %c0_28 = arith.constant 0 : index
    %21 = vector.load %arg6[%c0_26, %c1_27, %c0_28] : memref<4x18x18xf32, #tpu.memory_space<vmem>>, vector<4x16x16xf32>
    %22 = vector.shape_cast %21 : vector<4x16x16xf32> to vector<4x256xf32>
    %c12 = arith.constant 12 : index
    %c0_29 = arith.constant 0 : index
    %23 = vector.load %arg7[%c12, %c0_29] : memref<36x256xf32, #tpu.memory_space<vmem>>, vector<4x256xf32>
    tpu.vector_store %arg7[%c12, %c0_29], %22 {strides = array<i32>} : memref<36x256xf32, #tpu.memory_space<vmem>>, vector<4x256xf32>,
    %c0_30 = arith.constant 0 : index
    %c1_31 = arith.constant 1 : index
    %c1_32 = arith.constant 1 : index
    %24 = vector.load %arg6[%c0_30, %c1_31, %c1_32] : memref<4x18x18xf32, #tpu.memory_space<vmem>>, vector<4x16x16xf32>
    %25 = vector.shape_cast %24 : vector<4x16x16xf32> to vector<4x256xf32>
    %c16 = arith.constant 16 : index
    %c0_33 = arith.constant 0 : index
    %26 = vector.load %arg7[%c16, %c0_33] : memref<36x256xf32, #tpu.memory_space<vmem>>, vector<4x256xf32>
    tpu.vector_store %arg7[%c16, %c0_33], %25 {strides = array<i32>} : memref<36x256xf32, #tpu.memory_space<vmem>>, vector<4x256xf32>,
    %c0_34 = arith.constant 0 : index
    %c1_35 = arith.constant 1 : index
    %c2_36 = arith.constant 2 : index
    %27 = vector.load %arg6[%c0_34, %c1_35, %c2_36] : memref<4x18x18xf32, #tpu.memory_space<vmem>>, vector<4x16x16xf32>
    %28 = vector.shape_cast %27 : vector<4x16x16xf32> to vector<4x256xf32>
    %c20 = arith.constant 20 : index
    %c0_37 = arith.constant 0 : index
    %29 = vector.load %arg7[%c20, %c0_37] : memref<36x256xf32, #tpu.memory_space<vmem>>, vector<4x256xf32>
    tpu.vector_store %arg7[%c20, %c0_37], %28 {strides = array<i32>} : memref<36x256xf32, #tpu.memory_space<vmem>>, vector<4x256xf32>,
    %c0_38 = arith.constant 0 : index
    %c2_39 = arith.constant 2 : index
    %c0_40 = arith.constant 0 : index
    %30 = vector.load %arg6[%c0_38, %c2_39, %c0_40] : memref<4x18x18xf32, #tpu.memory_space<vmem>>, vector<4x16x16xf32>
    %31 = vector.shape_cast %30 : vector<4x16x16xf32> to vector<4x256xf32>
    %c24 = arith.constant 24 : index
    %c0_41 = arith.constant 0 : index
    %32 = vector.load %arg7[%c24, %c0_41] : memref<36x256xf32, #tpu.memory_space<vmem>>, vector<4x256xf32>
    tpu.vector_store %arg7[%c24, %c0_41], %31 {strides = array<i32>} : memref<36x256xf32, #tpu.memory_space<vmem>>, vector<4x256xf32>,
    %c0_42 = arith.constant 0 : index
    %c2_43 = arith.constant 2 : index
    %c1_44 = arith.constant 1 : index
    %33 = vector.load %arg6[%c0_42, %c2_43, %c1_44] : memref<4x18x18xf32, #tpu.memory_space<vmem>>, vector<4x16x16xf32>
    %34 = vector.shape_cast %33 : vector<4x16x16xf32> to vector<4x256xf32>
    %c28 = arith.constant 28 : index
    %c0_45 = arith.constant 0 : index
    %35 = vector.load %arg7[%c28, %c0_45] : memref<36x256xf32, #tpu.memory_space<vmem>>, vector<4x256xf32>
    tpu.vector_store %arg7[%c28, %c0_45], %34 {strides = array<i32>} : memref<36x256xf32, #tpu.memory_space<vmem>>, vector<4x256xf32>,
    %c0_46 = arith.constant 0 : index
    %c2_47 = arith.constant 2 : index
    %c2_48 = arith.constant 2 : index
    %36 = vector.load %arg6[%c0_46, %c2_47, %c2_48] : memref<4x18x18xf32, #tpu.memory_space<vmem>>, vector<4x16x16xf32>
    %37 = vector.shape_cast %36 : vector<4x16x16xf32> to vector<4x256xf32>
    %c32 = arith.constant 32 : index
    %c0_49 = arith.constant 0 : index
    %38 = vector.load %arg7[%c32, %c0_49] : memref<36x256xf32, #tpu.memory_space<vmem>>, vector<4x256xf32>
    tpu.vector_store %arg7[%c32, %c0_49], %37 {strides = array<i32>} : memref<36x256xf32, #tpu.memory_space<vmem>>, vector<4x256xf32>,
    %c0_50 = arith.constant 0 : index
    %c0_51 = arith.constant 0 : index
    %39 = vector.load %arg4[%c0_50, %c0_51] : memref<14x36xf32, #tpu.memory_space<vmem>>, vector<14x36xf32>
    %c0_52 = arith.constant 0 : index
    %c0_53 = arith.constant 0 : index
    %40 = vector.load %arg7[%c0_52, %c0_53] : memref<36x256xf32, #tpu.memory_space<vmem>>, vector<36x256xf32>
    %cst = arith.constant dense<0.000000e+00> : vector<14x256xf32>
    %41 = tpu.matmul %39, %40, %cst {dimension_numbers = #tpu.dot_dimension_numbers<[1], [0], [0], [1], [0, 0, 1, 1], [], []>} : vector<14x36xf32>, vector<36x256xf32>, vector<14x256xf32> -> vector<14x256xf32>
    %c0_54 = arith.constant 0 : index
    %c0_55 = arith.constant 0 : index
    %c0_56 = arith.constant 0 : index
    %42 = vector.load %arg5[%c0_54, %c0_55, %c0_56] : memref<1x14x256xf32, #tpu.memory_space<vmem>>, vector<1x14x256xf32>
    %43 = vector.shape_cast %42 : vector<1x14x256xf32> to vector<14x256xf32>
    %44 = vector.shape_cast %41 : vector<14x256xf32> to vector<1x14x256xf32>
    tpu.vector_store %arg5[%c0_54, %c0_55, %c0_56], %44 {strides = array<i32>} : memref<1x14x256xf32, #tpu.memory_space<vmem>>, vector<1x14x256xf32>,
    return
  }
  func.func @transform_0(%arg0: i32) -> (i32, i32, i32, i32) {
    %c0_i32 = arith.constant 0 : i32
    %c0_i32_0 = arith.constant 0 : i32
    %c0_i32_1 = arith.constant 0 : i32
    %c0_i32_2 = arith.constant 0 : i32
    return %arg0, %c0_i32, %c0_i32_0, %c0_i32_1 : i32, i32, i32, i32
  }
  func.func @transform_1(%arg0: i32) -> (i32, i32, i32) {
    %c0_i32 = arith.constant 0 : i32
    %c0_i32_0 = arith.constant 0 : i32
    %c0_i32_1 = arith.constant 0 : i32
    %c0_i32_2 = arith.constant 0 : i32
    return %c0_i32, %c0_i32_0, %c0_i32_1 : i32, i32, i32
  }
  func.func @transform_2(%arg0: i32) -> (i32, i32, i32) {
    %c0_i32 = arith.constant 0 : i32
    %c0_i32_0 = arith.constant 0 : i32
    %c0_i32_1 = arith.constant 0 : i32
    %c0_i32_2 = arith.constant 0 : i32
    return %c0_i32, %c0_i32_0, %c0_i32_1 : i32, i32, i32
  }
  func.func @transform_3(%arg0: i32) -> (i32, i32) {
    %c0_i32 = arith.constant 0 : i32
    %c0_i32_0 = arith.constant 0 : i32
    %c0_i32_1 = arith.constant 0 : i32
    return %c0_i32, %c0_i32_0 : i32, i32
  }
  func.func @transform_4(%arg0: i32) -> (i32, i32, i32) {
    %c0_i32 = arith.constant 0 : i32
    %c0_i32_0 = arith.constant 0 : i32
    %c0_i32_1 = arith.constant 0 : i32
    return %arg0, %c0_i32, %c0_i32_0 : i32, i32, i32
  }
}

</mosaic_0001>

<llo_original>
// kernel: tpu_custom_call.1
$region0: #{tpu_custom_call.1}
  #allocation0 [shape = 'u32[]', space=smem, size = 0x4, offset = 0x4, fixed_abs, tag = 'smem constant byte address 0x4 - core index']
  #allocation1 [shape = 'u32[144,128]{1,0:T(1,128)}', space=vmem, size = 0x12000, scoped, tag = 'internal scratch']
  #allocation2 [shape = 'f32[4,18,18]{2,1,0:T(8,128)}', space=vmem, size = 0xc000, scoped, tag = 'scratch operand']
  #allocation3 [shape = 'f32[36,256]{1,0:T(8,128)}', space=vmem, size = 0xa000, scoped, tag = 'scratch operand']
  %s0 = inlined_call_operand.hbm [shape: f32[2,4,16,16], index: 0, kind: input, shape index: {}]
  %s1 = inlined_call_operand.vmem [shape: f32[4,1,1], index: 1, kind: input, shape index: {}]
  %s2 = inlined_call_operand.vmem [shape: f32[4,1,1], index: 2, kind: input, shape index: {}]
  %s3 = inlined_call_operand.vmem [shape: f32[14,36], index: 3, kind: input, shape index: {}]
  %s4 = inlined_call_operand.vmem [shape: f32[2,14,256], index: 4, kind: output, shape index: {}]
  %s5 = sld [smem:[#allocation0]]
  $region53: #{tpu_custom_call.1} parent=0
    _
  %s7 = ssub.s32 1, %s5
  %s8 = scalar_select 0, %s7, %s5
  $region1: #{tpu_custom_call.1} parent=0
    #allocation4 [shape = 'u8[65536]{0}', space=vmem, size = 0x10000, scoped, tag = 'input window, operand 0']
    #allocation5 [shape = 's32[2]{0}', space=sflag, size = 0x8, scoped, tag = 'scoped memory for tpu_custom_call.1']
    %9 = vsyncpa [#allocation5], 0
    %s10 = scalar_lea.sflag [#allocation5], 1
    %11 = vsyncpa %s10, 0
    loop: start=0, step=1, limit=4
    $region2: #{tpu_custom_call.1} parent=1 // loop_pre_header
      _
    $region3: #{tpu_custom_call.1} parent=1 // loop_header
      %s13 = sphi 0, %s17
      %p14 = scmp.ge.s32.totalorder %s13, 4
      %s23 = sphi 0, %s25
      %s26 = sphi 0, %s23
      %s27 = sphi 0, %s26
      %s43 = sphi 0, %s27
      %s47 = sphi 0, %s47
      %s49 = sphi 0, %s47
      %s50 = sphi 0, %s49
      %s64 = sphi 0, %s50
      %s68 = sphi 0, %s68
      %s70 = sphi 0, %s68
      %s71 = sphi 0, %s70
      %s85 = sphi 0, %s71
      %s89 = sphi 0, %s89
      %s91 = sphi 0, %s89
      %s92 = sphi 0, %s91
      %s106 = sphi 0, %s92
      %s112 = sphi 0, %s114
      %s115 = sphi 0, %s112
      %s116 = sphi 0, %s115
      %s132 = sphi 0, %s116
    $region4: #{tpu_custom_call.1} parent=1 // loop_header_branch
      %16 = sbr.rel (%p14) target = $region8
    $region5: #{tpu_custom_call.1} parent=1 // loop_body
      %s18 = ssub.s32 %s13, 1
      %s19 = ssub.s32 %s13, 2
      %s20 = sadd.s32 %s13, 1
      %s21 = ssub.s32 %s13, %s20
      %p22 = scmp.eq.s32.totalorder %s21, 0
      %s24 = sadd.s32 %s23, 1
      %s25 = scalar_select %p22, %s23, %s24
      %p28 = pneg %p22
      %p29 = scmp.eq.s32.totalorder %s13, 1
      %p30 = por %p28, %p29
      %p31 = scmp.ne.s32.totalorder %s23, %s26
      %p32 = scmp.eq.s32.totalorder %s13, 0
      %p33 = por %p31, %p32
      %p34 = scmp.ne.s32.totalorder %s23, %s26
      %p35 = scmp.eq.s32.totalorder %s18, 1
      %p36 = por %p34, %p35
      %p37 = scmp.ne.s32.totalorder %s26, %s27
      %p38 = scmp.eq.s32.totalorder %s18, 0
      %p39 = por %p37, %p38
      %p40 = scmp.ne.s32.totalorder %s26, %s27
      %p41 = scmp.eq.s32.totalorder %s19, 1
      %p42 = por %p40, %p41
      %p44 = scmp.ne.s32.totalorder %s27, %s43
      %p45 = scmp.eq.s32.totalorder %s19, 0
      %p46 = por %p44, %p45
      %s48 = sadd.s32 %s47, 1
      %p51 = scmp.eq.s32.totalorder %s13, 1
      %p52 = scmp.ne.s32.totalorder %s47, %s49
      %p53 = scmp.eq.s32.totalorder %s13, 0
      %p54 = por %p52, %p53
      %p55 = scmp.ne.s32.totalorder %s47, %s49
      %p56 = scmp.eq.s32.totalorder %s18, 1
      %p57 = por %p55, %p56
      %p58 = scmp.ne.s32.totalorder %s49, %s50
      %p59 = scmp.eq.s32.totalorder %s18, 0
      %p60 = por %p58, %p59
      %p61 = scmp.ne.s32.totalorder %s49, %s50
      %p62 = scmp.eq.s32.totalorder %s19, 1
      %p63 = por %p61, %p62
      %p65 = scmp.ne.s32.totalorder %s50, %s64
      %p66 = scmp.eq.s32.totalorder %s19, 0
      %p67 = por %p65, %p66
      %s69 = sadd.s32 %s68, 1
      %p72 = scmp.eq.s32.totalorder %s13, 1
      %p73 = scmp.ne.s32.totalorder %s68, %s70
      %p74 = scmp.eq.s32.totalorder %s13, 0
      %p75 = por %p73, %p74
      %p76 = scmp.ne.s32.totalorder %s68, %s70
      %p77 = scmp.eq.s32.totalorder %s18, 1
      %p78 = por %p76, %p77
      %p79 = scmp.ne.s32.totalorder %s70, %s71
      %p80 = scmp.eq.s32.totalorder %s18, 0
      %p81 = por %p79, %p80
      %p82 = scmp.ne.s32.totalorder %s70, %s71
      %p83 = scmp.eq.s32.totalorder %s19, 1
      %p84 = por %p82, %p83
      %p86 = scmp.ne.s32.totalorder %s71, %s85
      %p87 = scmp.eq.s32.totalorder %s19, 0
      %p88 = por %p86, %p87
      %s90 = sadd.s32 %s89, 1
      %p93 = scmp.eq.s32.totalorder %s13, 1
      %p94 = scmp.ne.s32.totalorder %s89, %s91
      %p95 = scmp.eq.s32.totalorder %s13, 0
      %p96 = por %p94, %p95
      %p97 = scmp.ne.s32.totalorder %s89, %s91
      %p98 = scmp.eq.s32.totalorder %s18, 1
      %p99 = por %p97, %p98
      %p100 = scmp.ne.s32.totalorder %s91, %s92
      %p101 = scmp.eq.s32.totalorder %s18, 0
      %p102 = por %p100, %p101
      %p103 = scmp.ne.s32.totalorder %s91, %s92
      %p104 = scmp.eq.s32.totalorder %s19, 1
      %p105 = por %p103, %p104
      %p107 = scmp.ne.s32.totalorder %s92, %s106
      %p108 = scmp.eq.s32.totalorder %s19, 0
      %p109 = por %p107, %p108
      %s110 = ssub.s32 %s13, %s20
      %p111 = scmp.eq.s32.totalorder %s110, 0
      %s113 = sadd.s32 %s112, 1
      %s114 = scalar_select %p111, %s112, %s113
      %p117 = pneg %p111
      %p118 = scmp.eq.s32.totalorder %s13, 1
      %p119 = por %p117, %p118
      %p120 = scmp.ne.s32.totalorder %s112, %s115
      %p121 = scmp.eq.s32.totalorder %s13, 0
      %p122 = por %p120, %p121
      %p123 = scmp.ne.s32.totalorder %s112, %s115
      %p124 = scmp.eq.s32.totalorder %s18, 1
      %p125 = por %p123, %p124
      %p126 = scmp.ne.s32.totalorder %s115, %s116
      %p127 = scmp.eq.s32.totalorder %s18, 0
      %p128 = por %p126, %p127
      %p129 = scmp.ne.s32.totalorder %s115, %s116
      %p130 = scmp.eq.s32.totalorder %s19, 1
      %p131 = por %p129, %p130
      %p133 = scmp.ne.s32.totalorder %s116, %s132
      %p134 = scmp.eq.s32.totalorder %s19, 0
      %p135 = por %p133, %p134
      %p136 = scmp.le.s32.totalorder 1, %s13
      %p137 = scmp.lt.s32.totalorder %s13, 3
      %p138 = pnand %p136, %p137
      %p139 = pneg %p138
      // Predicated region
      $region9: #{tpu_custom_call.1} parent=5 // pred_check
        _
      $region10: #{tpu_custom_call.1} parent=5 // pred_check_branch
        %141 = sbr.rel (%p138) target = $region12
      $region11: #{tpu_custom_call.1} parent=5 // pred_region
        %s142 = ssub.s32 %s13, 1
        // Predicated region
        $region13: #{tpu_custom_call.1} parent=11 // pred_check
          %p143 = pneg %p60
        $region14: #{tpu_custom_call.1} parent=11 // pred_check_branch
          %145 = sbr.rel (%p143) target = $region16
        $region15: #{tpu_custom_call.1} parent=11 // pred_region
          _
        $region16: #{tpu_custom_call.1} parent=11 // pred_fallthru
          _
        // Predicated region
        $region17: #{tpu_custom_call.1} parent=11 // pred_check
          %p146 = pneg %p81
        $region18: #{tpu_custom_call.1} parent=11 // pred_check_branch
          %148 = sbr.rel (%p146) target = $region20
        $region19: #{tpu_custom_call.1} parent=11 // pred_region
          _
        $region20: #{tpu_custom_call.1} parent=11 // pred_fallthru
          _
        // Predicated region
        $region21: #{tpu_custom_call.1} parent=11 // pred_check
          %p149 = pneg %p102
        $region22: #{tpu_custom_call.1} parent=11 // pred_check_branch
          %151 = sbr.rel (%p149) target = $region24
        $region23: #{tpu_custom_call.1} parent=11 // pred_region
          _
        $region24: #{tpu_custom_call.1} parent=11 // pred_fallthru
          _
      $region12: #{tpu_custom_call.1} parent=5 // pred_fallthru
        _
      %p152 = scmp.lt.s32.totalorder %s13, 2
      // Predicated region
      $region25: #{tpu_custom_call.1} parent=5 // pred_check
        %p153 = pneg %p152
      $region26: #{tpu_custom_call.1} parent=5 // pred_check_branch
        %155 = sbr.rel (%p153) target = $region28
      $region27: #{tpu_custom_call.1} parent=5 // pred_region
        // Predicated region
        $region29: #{tpu_custom_call.1} parent=27 // pred_check
          %p156 = pneg %p33
        $region30: #{tpu_custom_call.1} parent=27 // pred_check_branch
          %158 = sbr.rel (%p156) target = $region32
        $region31: #{tpu_custom_call.1} parent=27 // pred_region
          %s159 = sand.u32 %s23, 1
          %s160 = scalar_lea.sflag [#allocation5], %s159
          %s161 = sand.u32 %s23, 1
          %s162 = smul.addr %s161, 64
          %s163 = scalar_lea.vmem [#allocation4], %s162
          %s165 = ssub.s32 1024, 1024
          %166 = vsyncadd %s160, %s165
          %s167 = smul.addr %s13, 8
          %s168 = smul.addr %s167, 128
          %s169 = scalar_lea.hbm %s0, %s168
          %s170 = sshll.u32 %s163, 4
          %s171 = int_to_ptr.vmem [resolvable:$true] %s170
          %176 = dma.hbm_to_vmem [thread:$0]  %s169, 1024, %s171, %s160, 128, 128, 8
        $region32: #{tpu_custom_call.1} parent=27 // pred_fallthru
          _
      $region28: #{tpu_custom_call.1} parent=5 // pred_fallthru
        _
      %p177 = scmp.le.s32.totalorder 1, %s13
      %p178 = scmp.lt.s32.totalorder %s13, 3
      %p179 = pnand %p177, %p178
      %p180 = pneg %p179
      // Predicated region
      $region33: #{tpu_custom_call.1} parent=5 // pred_check
        _
      $region34: #{tpu_custom_call.1} parent=5 // pred_check_branch
        %182 = sbr.rel (%p179) target = $region36
      $region35: #{tpu_custom_call.1} parent=5 // pred_region
        %s183 = ssub.s32 %s13, 1
        %s184 = sand.u32 %s26, 1
        %s185 = scalar_lea.sflag [#allocation5], %s184
        %s186 = sand.u32 %s26, 1
        %s187 = smul.addr %s186, 64
        %s188 = scalar_lea.vmem [#allocation4], %s187
        // Predicated region
        $region37: #{tpu_custom_call.1} parent=35 // pred_check
          %p189 = pneg %p39
        $region38: #{tpu_custom_call.1} parent=35 // pred_check_branch
          %191 = sbr.rel (%p189) target = $region40
        $region39: #{tpu_custom_call.1} parent=35 // pred_region
          %192 = dma.done %s185, 1024
        $region40: #{tpu_custom_call.1} parent=35 // pred_fallthru
          _
        %s193 = sand.u32 %s26, 1
        %s194 = scalar_lea.sflag [#allocation5], %s193
        %s195 = sand.u32 %s26, 1
        %s196 = smul.addr %s195, 64
        %s197 = scalar_lea.vmem [#allocation4], %s196
        %p198 = pneg %p39
        %p199 = pneg %p36
        %p200 = pneg %p60
        %p201 = pneg %p57
        %p202 = pneg %p81
        %p203 = pneg %p78
        %p204 = pneg %p102
        %p205 = pneg %p99
        %p206 = pneg %p128
        %p207 = pneg %p125
        %p208 = scmp.lt.s32.totalorder %s18, 1
        %s209 = scalar_select %p208, %s18, 1
        %s210 = smul.addr %s209, 4
        %s211 = smul.addr %s210, 8
        %s212 = scalar_lea.vmem %s4, %s211
        %p213 = scmp.lt.s32.totalorder %s18, 1
        %s214 = scalar_select %p213, %s18, 1
        %s215 = smul.addr %s214, 4
        %s216 = smul.addr %s215, 8
        %s217 = scalar_lea.vmem %s4, %s216
        %v218 = vld [vmem:[%s1] sm:$0x1]
        %v219 = vld [vmem:[%s1 + $0x1] sm:$0x1]
        %v220 = vld [vmem:[%s1 + $0x2] sm:$0x1]
        %v221 = vld [vmem:[%s1 + $0x3] sm:$0x1]
        %v222 = vld [vmem:[%s2] sm:$0x1]
        %v223 = vld [vmem:[%s2 + $0x1] sm:$0x1]
        %v224 = vld [vmem:[%s2 + $0x2] sm:$0x1]
        %v225 = vld [vmem:[%s2 + $0x3] sm:$0x1]
        %v230 = vlaneseq
        %v231 = vshrl.u32 %v230, 7
        %v232 = vsub.s32 0, %v231
        %v233 = vrot.slane %v222, %v232
        %v234 = vlaneseq
        %v235 = vshrl.u32 %v234, 7
        %v236 = vsub.s32 0, %v235
        %v237 = vrot.slane %v223, %v236
        %v238 = vlaneseq
        %v239 = vshrl.u32 %v238, 7
        %v240 = vsub.s32 0, %v239
        %v241 = vrot.slane %v224, %v240
        %v242 = vlaneseq
        %v243 = vshrl.u32 %v242, 7
        %v244 = vsub.s32 0, %v243
        %v245 = vrot.slane %v225, %v244
        %246 = vset.pattern.permute.xlu0 0
        %247 = vperm.xlu0 %246, %v233
        %v248 = vpop.permute.xlu0 %247
        %250 = vset.pattern.permute.xlu0 0
        %251 = vperm.xlu0 %250, %v237
        %v252 = vpop.permute.xlu0 %251
        %254 = vset.pattern.permute.xlu0 0
        %255 = vperm.xlu0 %254, %v241
        %v256 = vpop.permute.xlu0 %255
        %258 = vset.pattern.permute.xlu0 0
        %259 = vperm.xlu0 %258, %v245
        %v260 = vpop.permute.xlu0 %259
        %vm262 = vcmask 146432
        %263 = vst.msk [vmem:[#allocation2] sm:$0xff] %vm262, %v248
        %264 = vst.msk [vmem:[#allocation2 + $0x8] sm:$0xff] %vm262, %v248
        %vm265 = vcmask 140288
        %266 = vst.msk [vmem:[#allocation2 + $0x10] sm:$0x3] %vm265, %v248
        %267 = vst.msk [vmem:[#allocation2 + $0x18] sm:$0xff] %vm262, %v252
        %268 = vst.msk [vmem:[#allocation2 + $0x20] sm:$0xff] %vm262, %v252
        %269 = vst.msk [vmem:[#allocation2 + $0x28] sm:$0x3] %vm265, %v252
        %270 = vst.msk [vmem:[#allocation2 + $0x30] sm:$0xff] %vm262, %v256
        %271 = vst.msk [vmem:[#allocation2 + $0x38] sm:$0xff] %vm262, %v256
        %272 = vst.msk [vmem:[#allocation2 + $0x40] sm:$0x3] %vm265, %v256
        %273 = vst.msk [vmem:[#allocation2 + $0x48] sm:$0xff] %vm262, %v260
        %274 = vst.msk [vmem:[#allocation2 + $0x50] sm:$0xff] %vm262, %v260
        %275 = vst.msk [vmem:[#allocation2 + $0x58] sm:$0x3] %vm265, %v260
        %v276 = vld [vmem:[%s188] sm:$0xff]
        %v277 = vld [vmem:[%s188 + $0x8] sm:$0xff]
        %v278 = vld [vmem:[%s188 + $0x10] sm:$0xff]
        %v279 = vld [vmem:[%s188 + $0x18] sm:$0xff]
        %v280 = vld [vmem:[%s188 + $0x20] sm:$0xff]
        %v281 = vld [vmem:[%s188 + $0x28] sm:$0xff]
        %v282 = vld [vmem:[%s188 + $0x30] sm:$0xff]
        %v283 = vld [vmem:[%s188 + $0x38] sm:$0xff]
        %v288 = vlaneseq
        %v289 = vshrl.u32 %v288, 7
        %v290 = vsub.s32 0, %v289
        %v291 = vrot.slane %v218, %v290
        %v292 = vlaneseq
        %v293 = vshrl.u32 %v292, 7
        %v294 = vsub.s32 0, %v293
        %v295 = vrot.slane %v219, %v294
        %v296 = vlaneseq
        %v297 = vshrl.u32 %v296, 7
        %v298 = vsub.s32 0, %v297
        %v299 = vrot.slane %v220, %v298
        %v300 = vlaneseq
        %v301 = vshrl.u32 %v300, 7
        %v302 = vsub.s32 0, %v301
        %v303 = vrot.slane %v221, %v302
        %304 = vset.pattern.permute.xlu0 0
        %305 = vperm.xlu0 %304, %v291
        %v306 = vpop.permute.xlu0 %305
        %308 = vset.pattern.permute.xlu0 0
        %309 = vperm.xlu0 %308, %v295
        %v310 = vpop.permute.xlu0 %309
        %312 = vset.pattern.permute.xlu0 0
        %313 = vperm.xlu0 %312, %v299
        %v314 = vpop.permute.xlu0 %313
        %316 = vset.pattern.permute.xlu0 0
        %317 = vperm.xlu0 %316, %v303
        %v318 = vpop.permute.xlu0 %317
        %v320 = vmul.f32 %v276, %v306
        %v321 = vmul.f32 %v277, %v306
        %v322 = vmul.f32 %v278, %v310
        %v323 = vmul.f32 %v279, %v310
        %v324 = vmul.f32 %v280, %v314
        %v325 = vmul.f32 %v281, %v314
        %v326 = vmul.f32 %v282, %v318
        %v327 = vmul.f32 %v283, %v318
        %v328 = vadd.f32 %v320, %v248
        %v329 = vadd.f32 %v321, %v248
        %v330 = vadd.f32 %v322, %v252
        %v331 = vadd.f32 %v323, %v252
        %v332 = vadd.f32 %v324, %v256
        %v333 = vadd.f32 %v325, %v256
        %v334 = vadd.f32 %v326, %v260
        %v335 = vadd.f32 %v327, %v260
        %344 = vrot.lane.b32.xlu0 %v328, 1
        %v345 = vpop.permute.xlu0 %344
        %346 = vrot.lane.b32.xlu0 %v329, 1
        %v347 = vpop.permute.xlu0 %346
        %348 = vrot.lane.b32.xlu0 %v330, 1
        %v349 = vpop.permute.xlu0 %348
        %350 = vrot.lane.b32.xlu0 %v331, 1
        %v351 = vpop.permute.xlu0 %350
        %352 = vrot.lane.b32.xlu0 %v332, 1
        %v353 = vpop.permute.xlu0 %352
        %354 = vrot.lane.b32.xlu0 %v333, 1
        %v355 = vpop.permute.xlu0 %354
        %356 = vrot.lane.b32.xlu0 %v334, 1
        %v357 = vpop.permute.xlu0 %356
        %358 = vrot.lane.b32.xlu0 %v335, 1
        %v359 = vpop.permute.xlu0 %358
        %vm368 = vcmask 138248
        %369 = vst.msk [vmem:[#allocation2 + $0x1] sm:$0xff] %vm368, %v345
        %370 = vst.msk [vmem:[#allocation2 + $0x9] sm:$0xff] %vm368, %v347
        %371 = vst.msk [vmem:[#allocation2 + $0x19] sm:$0xff] %vm368, %v349
        %372 = vst.msk [vmem:[#allocation2 + $0x21] sm:$0xff] %vm368, %v351
        %373 = vst.msk [vmem:[#allocation2 + $0x31] sm:$0xff] %vm368, %v353
        %374 = vst.msk [vmem:[#allocation2 + $0x39] sm:$0xff] %vm368, %v355
        %375 = vst.msk [vmem:[#allocation2 + $0x49] sm:$0xff] %vm368, %v357
        %376 = vst.msk [vmem:[#allocation2 + $0x51] sm:$0xff] %vm368, %v359
        %v377 = vld [vmem:[#allocation2] sm:$0xff]
        %v378 = vld [vmem:[#allocation2 + $0x8] sm:$0xff]
        %v379 = vld [vmem:[#allocation2 + $0x18] sm:$0xff]
        %v380 = vld [vmem:[#allocation2 + $0x20] sm:$0xff]
        %v381 = vld [vmem:[#allocation2 + $0x30] sm:$0xff]
        %v382 = vld [vmem:[#allocation2 + $0x38] sm:$0xff]
        %v383 = vld [vmem:[#allocation2 + $0x48] sm:$0xff]
        %v384 = vld [vmem:[#allocation2 + $0x50] sm:$0xff]
        %v385 = vcombine.low %v377, %v381
        %v386 = vcombine.high %v377, %v381
        %v388 = vunpack.c.l.s4 1983009808
        %v389 = vunpack.c.0.s8 %v388
        %v390 = vlaneseq
        %v391 = vshrl.u32 %v390, 7
        %v392 = vsub.s32 %v389, %v391
        %v393 = vrot.slane %v385, %v392
        %v395 = vunpack.c.l.s4 1983009808
        %v396 = vunpack.c.0.s8 %v395
        %v397 = vlaneseq
        %v398 = vshrl.u32 %v397, 7
        %v399 = vsub.s32 %v396, %v398
        %v400 = vrot.slane %v386, %v399
        %v401 = vcombine.low %v379, %v383
        %v402 = vcombine.high %v379, %v383
        %v404 = vunpack.c.l.s4 1983009808
        %v405 = vunpack.c.0.s8 %v404
        %v406 = vlaneseq
        %v407 = vshrl.u32 %v406, 7
        %v408 = vsub.s32 %v405, %v407
        %v409 = vrot.slane %v401, %v408
        %v411 = vunpack.c.l.s4 1983009808
        %v412 = vunpack.c.0.s8 %v411
        %v413 = vlaneseq
        %v414 = vshrl.u32 %v413, 7
        %v415 = vsub.s32 %v412, %v414
        %v416 = vrot.slane %v402, %v415
        %v417 = vcombine.low %v393, %v409
        %v418 = vcombine.high %v393, %v409
        %v420 = vunpack.c.l.s4 1934713408
        %v421 = vunpack.c.0.s8 %v420
        %v422 = vlaneseq
        %v423 = vshrl.u32 %v422, 7
        %v424 = vsub.s32 %v421, %v423
        %v425 = vrot.slane %v417, %v424
        %v427 = vunpack.c.l.s4 1934713408
        %v428 = vunpack.c.0.s8 %v427
        %v429 = vlaneseq
        %v430 = vshrl.u32 %v429, 7
        %v431 = vsub.s32 %v428, %v430
        %v432 = vrot.slane %v418, %v431
        %v433 = vcombine.low %v400, %v416
        %v434 = vcombine.high %v400, %v416
        %v436 = vunpack.c.l.s4 1934713408
        %v437 = vunpack.c.0.s8 %v436
        %v438 = vlaneseq
        %v439 = vshrl.u32 %v438, 7
        %v440 = vsub.s32 %v437, %v439
        %v441 = vrot.slane %v433, %v440
        %v443 = vunpack.c.l.s4 1934713408
        %v444 = vunpack.c.0.s8 %v443
        %v445 = vlaneseq
        %v446 = vshrl.u32 %v445, 7
        %v447 = vsub.s32 %v444, %v446
        %v448 = vrot.slane %v434, %v447
        %v449 = vcombine.high %v425, 0.0
        %v450 = vcombine.high %v432, 0.0
        %v451 = vcombine.high %v441, 0.0
        %v452 = vcombine.high %v448, 0.0
        %v453 = vcombine.low %v378, %v382
        %v454 = vcombine.high %v378, %v382
        %v456 = vunpack.c.l.s4 1983009808
        %v457 = vunpack.c.0.s8 %v456
        %v458 = vlaneseq
        %v459 = vshrl.u32 %v458, 7
        %v460 = vsub.s32 %v457, %v459
        %v461 = vrot.slane %v453, %v460
        %v463 = vunpack.c.l.s4 1983009808
        %v464 = vunpack.c.0.s8 %v463
        %v465 = vlaneseq
        %v466 = vshrl.u32 %v465, 7
        %v467 = vsub.s32 %v464, %v466
        %v468 = vrot.slane %v454, %v467
        %v469 = vcombine.low %v380, %v384
        %v470 = vcombine.high %v380, %v384
        %v472 = vunpack.c.l.s4 1983009808
        %v473 = vunpack.c.0.s8 %v472
        %v474 = vlaneseq
        %v475 = vshrl.u32 %v474, 7
        %v476 = vsub.s32 %v473, %v475
        %v477 = vrot.slane %v469, %v476
        %v479 = vunpack.c.l.s4 1983009808
        %v480 = vunpack.c.0.s8 %v479
        %v481 = vlaneseq
        %v482 = vshrl.u32 %v481, 7
        %v483 = vsub.s32 %v480, %v482
        %v484 = vrot.slane %v470, %v483
        %v485 = vcombine.low %v461, %v477
        %v486 = vcombine.high %v461, %v477
        %v488 = vunpack.c.l.s4 1934713408
        %v489 = vunpack.c.0.s8 %v488
        %v490 = vlaneseq
        %v491 = vshrl.u32 %v490, 7
        %v492 = vsub.s32 %v489, %v491
        %v493 = vrot.slane %v485, %v492
        %v495 = vunpack.c.l.s4 1934713408
        %v496 = vunpack.c.0.s8 %v495
        %v497 = vlaneseq
        %v498 = vshrl.u32 %v497, 7
        %v499 = vsub.s32 %v496, %v498
        %v500 = vrot.slane %v486, %v499
        %v501 = vcombine.low %v468, %v484
        %v502 = vcombine.high %v468, %v484
        %v504 = vunpack.c.l.s4 1934713408
        %v505 = vunpack.c.0.s8 %v504
        %v506 = vlaneseq
        %v507 = vshrl.u32 %v506, 7
        %v508 = vsub.s32 %v505, %v507
        %v509 = vrot.slane %v501, %v508
        %v511 = vunpack.c.l.s4 1934713408
        %v512 = vunpack.c.0.s8 %v511
        %v513 = vlaneseq
        %v514 = vshrl.u32 %v513, 7
        %v515 = vsub.s32 %v512, %v514
        %v516 = vrot.slane %v502, %v515
        %v517 = vcombine.high %v493, 0.0
        %v518 = vcombine.high %v500, 0.0
        %v519 = vcombine.high %v509, 0.0
        %v520 = vcombine.high %v516, 0.0
        %522 = vrot.lane.b32.xlu0 %v449, 16
        %v523 = vpop.permute.xlu0 %522
        %526 = vrot.lane.b32.xlu0 %v432, 32
        %v527 = vpop.permute.xlu0 %526
        %530 = vrot.lane.b32.xlu0 %v450, 48
        %v531 = vpop.permute.xlu0 %530
        %534 = vrot.lane.b32.xlu0 %v441, 64
        %v535 = vpop.permute.xlu0 %534
        %538 = vrot.lane.b32.xlu0 %v451, 80
        %v539 = vpop.permute.xlu0 %538
        %542 = vrot.lane.b32.xlu0 %v448, 96
        %v543 = vpop.permute.xlu0 %542
        %546 = vrot.lane.b32.xlu0 %v452, 112
        %v547 = vpop.permute.xlu0 %546
        %550 = vrot.lane.b32.xlu0 %v517, 16
        %v551 = vpop.permute.xlu0 %550
        %554 = vrot.lane.b32.xlu0 %v500, 32
        %v555 = vpop.permute.xlu0 %554
        %558 = vrot.lane.b32.xlu0 %v518, 48
        %v559 = vpop.permute.xlu0 %558
        %562 = vrot.lane.b32.xlu0 %v509, 64
        %v563 = vpop.permute.xlu0 %562
        %566 = vrot.lane.b32.xlu0 %v519, 80
        %v567 = vpop.permute.xlu0 %566
        %570 = vrot.lane.b32.xlu0 %v516, 96
        %v571 = vpop.permute.xlu0 %570
        %574 = vrot.lane.b32.xlu0 %v520, 112
        %v575 = vpop.permute.xlu0 %574
        %vm577 = vcmask 130048
        %v578 = vsel %vm577, %v425, %v523
        %vm579 = vcmask 261120
        %v580 = vsel %vm579, %v578, %v527
        %vm581 = vcmask 392192
        %v582 = vsel %vm581, %v580, %v531
        %vm583 = vcmask 523264
        %v584 = vsel %vm583, %v582, %v535
        %vm585 = vcmask 654336
        %v586 = vsel %vm585, %v584, %v539
        %vm587 = vcmask 785408
        %v588 = vsel %vm587, %v586, %v543
        %vm589 = vcmask 916480
        %v590 = vsel %vm589, %v588, %v547
        %v591 = vsel %vm577, %v493, %v551
        %v592 = vsel %vm579, %v591, %v555
        %v593 = vsel %vm581, %v592, %v559
        %v594 = vsel %vm583, %v593, %v563
        %v595 = vsel %vm585, %v594, %v567
        %v596 = vsel %vm587, %v595, %v571
        %v597 = vsel %vm589, %v596, %v575
        %598 = vst [vmem:[#allocation3] sm:$0xf] %v590
        %599 = vst [vmem:[#allocation3 + $0x8] sm:$0xf] %v597
        %v600 = vld [vmem:[#allocation2] sm:$0xff]
        %v601 = vld [vmem:[#allocation2 + $0x8] sm:$0xff]
        %v602 = vld [vmem:[#allocation2 + $0x18] sm:$0xff]
        %v603 = vld [vmem:[#allocation2 + $0x20] sm:$0xff]
        %v604 = vld [vmem:[#allocation2 + $0x30] sm:$0xff]
        %v605 = vld [vmem:[#allocation2 + $0x38] sm:$0xff]
        %v606 = vld [vmem:[#allocation2 + $0x48] sm:$0xff]
        %v607 = vld [vmem:[#allocation2 + $0x50] sm:$0xff]
        %616 = vrot.lane.b32.xlu0 %v600, 127
        %v617 = vpop.permute.xlu0 %616
        %618 = vrot.lane.b32.xlu0 %v601, 127
        %v619 = vpop.permute.xlu0 %618
        %620 = vrot.lane.b32.xlu0 %v602, 127
        %v621 = vpop.permute.xlu0 %620
        %622 = vrot.lane.b32.xlu0 %v603, 127
        %v623 = vpop.permute.xlu0 %622
        %624 = vrot.lane.b32.xlu0 %v604, 127
        %v625 = vpop.permute.xlu0 %624
        %626 = vrot.lane.b32.xlu0 %v605, 127
        %v627 = vpop.permute.xlu0 %626
        %628 = vrot.lane.b32.xlu0 %v606, 127
        %v629 = vpop.permute.xlu0 %628
        %630 = vrot.lane.b32.xlu0 %v607, 127
        %v631 = vpop.permute.xlu0 %630
        %v640 = vcombine.low %v617, %v625
        %v641 = vcombine.high %v617, %v625
        %v643 = vunpack.c.l.s4 1983009808
        %v644 = vunpack.c.0.s8 %v643
        %v645 = vlaneseq
        %v646 = vshrl.u32 %v645, 7
        %v647 = vsub.s32 %v644, %v646
        %v648 = vrot.slane %v640, %v647
        %v650 = vunpack.c.l.s4 1983009808
        %v651 = vunpack.c.0.s8 %v650
        %v652 = vlaneseq
        %v653 = vshrl.u32 %v652, 7
        %v654 = vsub.s32 %v651, %v653
        %v655 = vrot.slane %v641, %v654
        %v656 = vcombine.low %v621, %v629
        %v657 = vcombine.high %v621, %v629
        %v659 = vunpack.c.l.s4 1983009808
        %v660 = vunpack.c.0.s8 %v659
        %v661 = vlaneseq
        %v662 = vshrl.u32 %v661, 7
        %v663 = vsub.s32 %v660, %v662
        %v664 = vrot.slane %v656, %v663
        %v666 = vunpack.c.l.s4 1983009808
        %v667 = vunpack.c.0.s8 %v666
        %v668 = vlaneseq
        %v669 = vshrl.u32 %v668, 7
        %v670 = vsub.s32 %v667, %v669
        %v671 = vrot.slane %v657, %v670
        %v672 = vcombine.low %v648, %v664
        %v673 = vcombine.high %v648, %v664
        %v675 = vunpack.c.l.s4 1934713408
        %v676 = vunpack.c.0.s8 %v675
        %v677 = vlaneseq
        %v678 = vshrl.u32 %v677, 7
        %v679 = vsub.s32 %v676, %v678
        %v680 = vrot.slane %v672, %v679
        %v682 = vunpack.c.l.s4 1934713408
        %v683 = vunpack.c.0.s8 %v682
        %v684 = vlaneseq
        %v685 = vshrl.u32 %v684, 7
        %v686 = vsub.s32 %v683, %v685
        %v687 = vrot.slane %v673, %v686
        %v688 = vcombine.low %v655, %v671
        %v689 = vcombine.high %v655, %v671
        %v691 = vunpack.c.l.s4 1934713408
        %v692 = vunpack.c.0.s8 %v691
        %v693 = vlaneseq
        %v694 = vshrl.u32 %v693, 7
        %v695 = vsub.s32 %v692, %v694
        %v696 = vrot.slane %v688, %v695
        %v698 = vunpack.c.l.s4 1934713408
        %v699 = vunpack.c.0.s8 %v698
        %v700 = vlaneseq
        %v701 = vshrl.u32 %v700, 7
        %v702 = vsub.s32 %v699, %v701
        %v703 = vrot.slane %v689, %v702
        %v704 = vcombine.high %v680, 0.0
        %v705 = vcombine.high %v687, 0.0
        %v706 = vcombine.high %v696, 0.0
        %v707 = vcombine.high %v703, 0.0
        %v708 = vcombine.low %v619, %v627
        %v709 = vcombine.high %v619, %v627
        %v711 = vunpack.c.l.s4 1983009808
        %v712 = vunpack.c.0.s8 %v711
        %v713 = vlaneseq
        %v714 = vshrl.u32 %v713, 7
        %v715 = vsub.s32 %v712, %v714
        %v716 = vrot.slane %v708, %v715
        %v718 = vunpack.c.l.s4 1983009808
        %v719 = vunpack.c.0.s8 %v718
        %v720 = vlaneseq
        %v721 = vshrl.u32 %v720, 7
        %v722 = vsub.s32 %v719, %v721
        %v723 = vrot.slane %v709, %v722
        %v724 = vcombine.low %v623, %v631
        %v725 = vcombine.high %v623, %v631
        %v727 = vunpack.c.l.s4 1983009808
        %v728 = vunpack.c.0.s8 %v727
        %v729 = vlaneseq
        %v730 = vshrl.u32 %v729, 7
        %v731 = vsub.s32 %v728, %v730
        %v732 = vrot.slane %v724, %v731
        %v734 = vunpack.c.l.s4 1983009808
        %v735 = vunpack.c.0.s8 %v734
        %v736 = vlaneseq
        %v737 = vshrl.u32 %v736, 7
        %v738 = vsub.s32 %v735, %v737
        %v739 = vrot.slane %v725, %v738
        %v740 = vcombine.low %v716, %v732
        %v741 = vcombine.high %v716, %v732
        %v743 = vunpack.c.l.s4 1934713408
        %v744 = vunpack.c.0.s8 %v743
        %v745 = vlaneseq
        %v746 = vshrl.u32 %v745, 7
        %v747 = vsub.s32 %v744, %v746
        %v748 = vrot.slane %v740, %v747
        %v750 = vunpack.c.l.s4 1934713408
        %v751 = vunpack.c.0.s8 %v750
        %v752 = vlaneseq
        %v753 = vshrl.u32 %v752, 7
        %v754 = vsub.s32 %v751, %v753
        %v755 = vrot.slane %v741, %v754
        %v756 = vcombine.low %v723, %v739
        %v757 = vcombine.high %v723, %v739
        %v759 = vunpack.c.l.s4 1934713408
        %v760 = vunpack.c.0.s8 %v759
        %v761 = vlaneseq
        %v762 = vshrl.u32 %v761, 7
        %v763 = vsub.s32 %v760, %v762
        %v764 = vrot.slane %v756, %v763
        %v766 = vunpack.c.l.s4 1934713408
        %v767 = vunpack.c.0.s8 %v766
        %v768 = vlaneseq
        %v769 = vshrl.u32 %v768, 7
        %v770 = vsub.s32 %v767, %v769
        %v771 = vrot.slane %v757, %v770
        %v772 = vcombine.high %v748, 0.0
        %v773 = vcombine.high %v755, 0.0
        %v774 = vcombine.high %v764, 0.0
        %v775 = vcombine.high %v771, 0.0
        %777 = vrot.lane.b32.xlu0 %v704, 16
        %v778 = vpop.permute.xlu0 %777
        %781 = vrot.lane.b32.xlu0 %v687, 32
        %v782 = vpop.permute.xlu0 %781
        %785 = vrot.lane.b32.xlu0 %v705, 48
        %v786 = vpop.permute.xlu0 %785
        %789 = vrot.lane.b32.xlu0 %v696, 64
        %v790 = vpop.permute.xlu0 %789
        %793 = vrot.lane.b32.xlu0 %v706, 80
        %v794 = vpop.permute.xlu0 %793
        %797 = vrot.lane.b32.xlu0 %v703, 96
        %v798 = vpop.permute.xlu0 %797
        %801 = vrot.lane.b32.xlu0 %v707, 112
        %v802 = vpop.permute.xlu0 %801
        %805 = vrot.lane.b32.xlu0 %v772, 16
        %v806 = vpop.permute.xlu0 %805
        %809 = vrot.lane.b32.xlu0 %v755, 32
        %v810 = vpop.permute.xlu0 %809
        %813 = vrot.lane.b32.xlu0 %v773, 48
        %v814 = vpop.permute.xlu0 %813
        %817 = vrot.lane.b32.xlu0 %v764, 64
        %v818 = vpop.permute.xlu0 %817
        %821 = vrot.lane.b32.xlu0 %v774, 80
        %v822 = vpop.permute.xlu0 %821
        %825 = vrot.lane.b32.xlu0 %v771, 96
        %v826 = vpop.permute.xlu0 %825
        %829 = vrot.lane.b32.xlu0 %v775, 112
        %v830 = vpop.permute.xlu0 %829
        %v832 = vsel %vm577, %v680, %v778
        %v833 = vsel %vm579, %v832, %v782
        %v834 = vsel %vm581, %v833, %v786
        %v835 = vsel %vm583, %v834, %v790
        %v836 = vsel %vm585, %v835, %v794
        %v837 = vsel %vm587, %v836, %v798
        %v838 = vsel %vm589, %v837, %v802
        %v839 = vsel %vm577, %v748, %v806
        %v840 = vsel %vm579, %v839, %v810
        %v841 = vsel %vm581, %v840, %v814
        %v842 = vsel %vm583, %v841, %v818
        %v843 = vsel %vm585, %v842, %v822
        %v844 = vsel %vm587, %v843, %v826
        %v845 = vsel %vm589, %v844, %v830
        %v848 = vrot.slane %v838, 4
        %v849 = vrot.slane %v845, 4
        %852 = vst [vmem:[#allocation3] sm:$0xf0] %v848
        %853 = vst [vmem:[#allocation3 + $0x8] sm:$0xf0] %v849
        %v854 = vld [vmem:[#allocation2] sm:$0xff]
        %v855 = vld [vmem:[#allocation2 + $0x8] sm:$0xff]
        %v856 = vld [vmem:[#allocation2 + $0x18] sm:$0xff]
        %v857 = vld [vmem:[#allocation2 + $0x20] sm:$0xff]
        %v858 = vld [vmem:[#allocation2 + $0x30] sm:$0xff]
        %v859 = vld [vmem:[#allocation2 + $0x38] sm:$0xff]
        %v860 = vld [vmem:[#allocation2 + $0x48] sm:$0xff]
        %v861 = vld [vmem:[#allocation2 + $0x50] sm:$0xff]
        %870 = vrot.lane.b32.xlu0 %v854, 126
        %v871 = vpop.permute.xlu0 %870
        %872 = vrot.lane.b32.xlu0 %v855, 126
        %v873 = vpop.permute.xlu0 %872
        %874 = vrot.lane.b32.xlu0 %v856, 126
        %v875 = vpop.permute.xlu0 %874
        %876 = vrot.lane.b32.xlu0 %v857, 126
        %v877 = vpop.permute.xlu0 %876
        %878 = vrot.lane.b32.xlu0 %v858, 126
        %v879 = vpop.permute.xlu0 %878
        %880 = vrot.lane.b32.xlu0 %v859, 126
        %v881 = vpop.permute.xlu0 %880
        %882 = vrot.lane.b32.xlu0 %v860, 126
        %v883 = vpop.permute.xlu0 %882
        %884 = vrot.lane.b32.xlu0 %v861, 126
        %v885 = vpop.permute.xlu0 %884
        %v894 = vcombine.low %v871, %v879
        %v895 = vcombine.high %v871, %v879
        %v897 = vunpack.c.l.s4 1983009808
        %v898 = vunpack.c.0.s8 %v897
        %v899 = vlaneseq
        %v900 = vshrl.u32 %v899, 7
        %v901 = vsub.s32 %v898, %v900
        %v902 = vrot.slane %v894, %v901
        %v904 = vunpack.c.l.s4 1983009808
        %v905 = vunpack.c.0.s8 %v904
        %v906 = vlaneseq
        %v907 = vshrl.u32 %v906, 7
        %v908 = vsub.s32 %v905, %v907
        %v909 = vrot.slane %v895, %v908
        %v910 = vcombine.low %v875, %v883
        %v911 = vcombine.high %v875, %v883
        %v913 = vunpack.c.l.s4 1983009808
        %v914 = vunpack.c.0.s8 %v913
        %v915 = vlaneseq
        %v916 = vshrl.u32 %v915, 7
        %v917 = vsub.s32 %v914, %v916
        %v918 = vrot.slane %v910, %v917
        %v920 = vunpack.c.l.s4 1983009808
        %v921 = vunpack.c.0.s8 %v920
        %v922 = vlaneseq
        %v923 = vshrl.u32 %v922, 7
        %v924 = vsub.s32 %v921, %v923
        %v925 = vrot.slane %v911, %v924
        %v926 = vcombine.low %v902, %v918
        %v927 = vcombine.high %v902, %v918
        %v929 = vunpack.c.l.s4 1934713408
        %v930 = vunpack.c.0.s8 %v929
        %v931 = vlaneseq
        %v932 = vshrl.u32 %v931, 7
        %v933 = vsub.s32 %v930, %v932
        %v934 = vrot.slane %v926, %v933
        %v936 = vunpack.c.l.s4 1934713408
        %v937 = vunpack.c.0.s8 %v936
        %v938 = vlaneseq
        %v939 = vshrl.u32 %v938, 7
        %v940 = vsub.s32 %v937, %v939
        %v941 = vrot.slane %v927, %v940
        %v942 = vcombine.low %v909, %v925
        %v943 = vcombine.high %v909, %v925
        %v945 = vunpack.c.l.s4 1934713408
        %v946 = vunpack.c.0.s8 %v945
        %v947 = vlaneseq
        %v948 = vshrl.u32 %v947, 7
        %v949 = vsub.s32 %v946, %v948
        %v950 = vrot.slane %v942, %v949
        %v952 = vunpack.c.l.s4 1934713408
        %v953 = vunpack.c.0.s8 %v952
        %v954 = vlaneseq
        %v955 = vshrl.u32 %v954, 7
        %v956 = vsub.s32 %v953, %v955
        %v957 = vrot.slane %v943, %v956
        %v958 = vcombine.high %v934, 0.0
        %v959 = vcombine.high %v941, 0.0
        %v960 = vcombine.high %v950, 0.0
        %v961 = vcombine.high %v957, 0.0
        %v962 = vcombine.low %v873, %v881
        %v963 = vcombine.high %v873, %v881
        %v965 = vunpack.c.l.s4 1983009808
        %v966 = vunpack.c.0.s8 %v965
        %v967 = vlaneseq
        %v968 = vshrl.u32 %v967, 7
        %v969 = vsub.s32 %v966, %v968
        %v970 = vrot.slane %v962, %v969
        %v972 = vunpack.c.l.s4 1983009808
        %v973 = vunpack.c.0.s8 %v972
        %v974 = vlaneseq
        %v975 = vshrl.u32 %v974, 7
        %v976 = vsub.s32 %v973, %v975
        %v977 = vrot.slane %v963, %v976
        %v978 = vcombine.low %v877, %v885
        %v979 = vcombine.high %v877, %v885
        %v981 = vunpack.c.l.s4 1983009808
        %v982 = vunpack.c.0.s8 %v981
        %v983 = vlaneseq
        %v984 = vshrl.u32 %v983, 7
        %v985 = vsub.s32 %v982, %v984
        %v986 = vrot.slane %v978, %v985
        %v988 = vunpack.c.l.s4 1983009808
        %v989 = vunpack.c.0.s8 %v988
        %v990 = vlaneseq
        %v991 = vshrl.u32 %v990, 7
        %v992 = vsub.s32 %v989, %v991
        %v993 = vrot.slane %v979, %v992
        %v994 = vcombine.low %v970, %v986
        %v995 = vcombine.high %v970, %v986
        %v997 = vunpack.c.l.s4 1934713408
        %v998 = vunpack.c.0.s8 %v997
        %v999 = vlaneseq
        %v1000 = vshrl.u32 %v999, 7
        %v1001 = vsub.s32 %v998, %v1000
        %v1002 = vrot.slane %v994, %v1001
        %v1004 = vunpack.c.l.s4 1934713408
        %v1005 = vunpack.c.0.s8 %v1004
        %v1006 = vlaneseq
        %v1007 = vshrl.u32 %v1006, 7
        %v1008 = vsub.s32 %v1005, %v1007
        %v1009 = vrot.slane %v995, %v1008
        %v1010 = vcombine.low %v977, %v993
        %v1011 = vcombine.high %v977, %v993
        %v1013 = vunpack.c.l.s4 1934713408
        %v1014 = vunpack.c.0.s8 %v1013
        %v1015 = vlaneseq
        %v1016 = vshrl.u32 %v1015, 7
        %v1017 = vsub.s32 %v1014, %v1016
        %v1018 = vrot.slane %v1010, %v1017
        %v1020 = vunpack.c.l.s4 1934713408
        %v1021 = vunpack.c.0.s8 %v1020
        %v1022 = vlaneseq
        %v1023 = vshrl.u32 %v1022, 7
        %v1024 = vsub.s32 %v1021, %v1023
        %v1025 = vrot.slane %v1011, %v1024
        %v1026 = vcombine.high %v1002, 0.0
        %v1027 = vcombine.high %v1009, 0.0
        %v1028 = vcombine.high %v1018, 0.0
        %v1029 = vcombine.high %v1025, 0.0
        %1031 = vrot.lane.b32.xlu0 %v958, 16
        %v1032 = vpop.permute.xlu0 %1031
        %1035 = vrot.lane.b32.xlu0 %v941, 32
        %v1036 = vpop.permute.xlu0 %1035
        %1039 = vrot.lane.b32.xlu0 %v959, 48
        %v1040 = vpop.permute.xlu0 %1039
        %1043 = vrot.lane.b32.xlu0 %v950, 64
        %v1044 = vpop.permute.xlu0 %1043
        %1047 = vrot.lane.b32.xlu0 %v960, 80
        %v1048 = vpop.permute.xlu0 %1047
        %1051 = vrot.lane.b32.xlu0 %v957, 96
        %v1052 = vpop.permute.xlu0 %1051
        %1055 = vrot.lane.b32.xlu0 %v961, 112
        %v1056 = vpop.permute.xlu0 %1055
        %1059 = vrot.lane.b32.xlu0 %v1026, 16
        %v1060 = vpop.permute.xlu0 %1059
        %1063 = vrot.lane.b32.xlu0 %v1009, 32
        %v1064 = vpop.permute.xlu0 %1063
        %1067 = vrot.lane.b32.xlu0 %v1027, 48
        %v1068 = vpop.permute.xlu0 %1067
        %1071 = vrot.lane.b32.xlu0 %v1018, 64
        %v1072 = vpop.permute.xlu0 %1071
        %1075 = vrot.lane.b32.xlu0 %v1028, 80
        %v1076 = vpop.permute.xlu0 %1075
        %1079 = vrot.lane.b32.xlu0 %v1025, 96
        %v1080 = vpop.permute.xlu0 %1079
        %1083 = vrot.lane.b32.xlu0 %v1029, 112
        %v1084 = vpop.permute.xlu0 %1083
        %v1086 = vsel %vm577, %v934, %v1032
        %v1087 = vsel %vm579, %v1086, %v1036
        %v1088 = vsel %vm581, %v1087, %v1040
        %v1089 = vsel %vm583, %v1088, %v1044
        %v1090 = vsel %vm585, %v1089, %v1048
        %v1091 = vsel %vm587, %v1090, %v1052
        %v1092 = vsel %vm589, %v1091, %v1056
        %v1093 = vsel %vm577, %v1002, %v1060
        %v1094 = vsel %vm579, %v1093, %v1064
        %v1095 = vsel %vm581, %v1094, %v1068
        %v1096 = vsel %vm583, %v1095, %v1072
        %v1097 = vsel %vm585, %v1096, %v1076
        %v1098 = vsel %vm587, %v1097, %v1080
        %v1099 = vsel %vm589, %v1098, %v1084
        %1100 = vst [vmem:[#allocation3 + $0x10] sm:$0xf] %v1092
        %1101 = vst [vmem:[#allocation3 + $0x18] sm:$0xf] %v1099
        %v1102 = vld [vmem:[#allocation2 + $0x1] sm:$0xff]
        %v1103 = vld [vmem:[#allocation2 + $0x9] sm:$0xff]
        %v1104 = vld [vmem:[#allocation2 + $0x19] sm:$0xff]
        %v1105 = vld [vmem:[#allocation2 + $0x21] sm:$0xff]
        %v1106 = vld [vmem:[#allocation2 + $0x31] sm:$0xff]
        %v1107 = vld [vmem:[#allocation2 + $0x39] sm:$0xff]
        %v1108 = vld [vmem:[#allocation2 + $0x49] sm:$0xff]
        %v1109 = vld [vmem:[#allocation2 + $0x51] sm:$0xff]
        %v1110 = vcombine.low %v1102, %v1106
        %v1111 = vcombine.high %v1102, %v1106
        %v1113 = vunpack.c.l.s4 1983009808
        %v1114 = vunpack.c.0.s8 %v1113
        %v1115 = vlaneseq
        %v1116 = vshrl.u32 %v1115, 7
        %v1117 = vsub.s32 %v1114, %v1116
        %v1118 = vrot.slane %v1110, %v1117
        %v1120 = vunpack.c.l.s4 1983009808
        %v1121 = vunpack.c.0.s8 %v1120
        %v1122 = vlaneseq
        %v1123 = vshrl.u32 %v1122, 7
        %v1124 = vsub.s32 %v1121, %v1123
        %v1125 = vrot.slane %v1111, %v1124
        %v1126 = vcombine.low %v1104, %v1108
        %v1127 = vcombine.high %v1104, %v1108
        %v1129 = vunpack.c.l.s4 1983009808
        %v1130 = vunpack.c.0.s8 %v1129
        %v1131 = vlaneseq
        %v1132 = vshrl.u32 %v1131, 7
        %v1133 = vsub.s32 %v1130, %v1132
        %v1134 = vrot.slane %v1126, %v1133
        %v1136 = vunpack.c.l.s4 1983009808
        %v1137 = vunpack.c.0.s8 %v1136
        %v1138 = vlaneseq
        %v1139 = vshrl.u32 %v1138, 7
        %v1140 = vsub.s32 %v1137, %v1139
        %v1141 = vrot.slane %v1127, %v1140
        %v1142 = vcombine.low %v1118, %v1134
        %v1143 = vcombine.high %v1118, %v1134
        %v1145 = vunpack.c.l.s4 1934713408
        %v1146 = vunpack.c.0.s8 %v1145
        %v1147 = vlaneseq
        %v1148 = vshrl.u32 %v1147, 7
        %v1149 = vsub.s32 %v1146, %v1148
        %v1150 = vrot.slane %v1142, %v1149
        %v1152 = vunpack.c.l.s4 1934713408
        %v1153 = vunpack.c.0.s8 %v1152
        %v1154 = vlaneseq
        %v1155 = vshrl.u32 %v1154, 7
        %v1156 = vsub.s32 %v1153, %v1155
        %v1157 = vrot.slane %v1143, %v1156
        %v1158 = vcombine.low %v1125, %v1141
        %v1159 = vcombine.high %v1125, %v1141
        %v1161 = vunpack.c.l.s4 1934713408
        %v1162 = vunpack.c.0.s8 %v1161
        %v1163 = vlaneseq
        %v1164 = vshrl.u32 %v1163, 7
        %v1165 = vsub.s32 %v1162, %v1164
        %v1166 = vrot.slane %v1158, %v1165
        %v1168 = vunpack.c.l.s4 1934713408
        %v1169 = vunpack.c.0.s8 %v1168
        %v1170 = vlaneseq
        %v1171 = vshrl.u32 %v1170, 7
        %v1172 = vsub.s32 %v1169, %v1171
        %v1173 = vrot.slane %v1159, %v1172
        %v1174 = vcombine.high %v1150, 0.0
        %v1175 = vcombine.high %v1157, 0.0
        %v1176 = vcombine.high %v1166, 0.0
        %v1177 = vcombine.high %v1173, 0.0
        %v1178 = vcombine.low %v1103, %v1107
        %v1179 = vcombine.high %v1103, %v1107
        %v1181 = vunpack.c.l.s4 1983009808
        %v1182 = vunpack.c.0.s8 %v1181
        %v1183 = vlaneseq
        %v1184 = vshrl.u32 %v1183, 7
        %v1185 = vsub.s32 %v1182, %v1184
        %v1186 = vrot.slane %v1178, %v1185
        %v1188 = vunpack.c.l.s4 1983009808
        %v1189 = vunpack.c.0.s8 %v1188
        %v1190 = vlaneseq
        %v1191 = vshrl.u32 %v1190, 7
        %v1192 = vsub.s32 %v1189, %v1191
        %v1193 = vrot.slane %v1179, %v1192
        %v1194 = vcombine.low %v1105, %v1109
        %v1195 = vcombine.high %v1105, %v1109
        %v1197 = vunpack.c.l.s4 1983009808
        %v1198 = vunpack.c.0.s8 %v1197
        %v1199 = vlaneseq
        %v1200 = vshrl.u32 %v1199, 7
        %v1201 = vsub.s32 %v1198, %v1200
        %v1202 = vrot.slane %v1194, %v1201
        %v1204 = vunpack.c.l.s4 1983009808
        %v1205 = vunpack.c.0.s8 %v1204
        %v1206 = vlaneseq
        %v1207 = vshrl.u32 %v1206, 7
        %v1208 = vsub.s32 %v1205, %v1207
        %v1209 = vrot.slane %v1195, %v1208
        %v1210 = vcombine.low %v1186, %v1202
        %v1211 = vcombine.high %v1186, %v1202
        %v1213 = vunpack.c.l.s4 1934713408
        %v1214 = vunpack.c.0.s8 %v1213
        %v1215 = vlaneseq
        %v1216 = vshrl.u32 %v1215, 7
        %v1217 = vsub.s32 %v1214, %v1216
        %v1218 = vrot.slane %v1210, %v1217
        %v1220 = vunpack.c.l.s4 1934713408
        %v1221 = vunpack.c.0.s8 %v1220
        %v1222 = vlaneseq
        %v1223 = vshrl.u32 %v1222, 7
        %v1224 = vsub.s32 %v1221, %v1223
        %v1225 = vrot.slane %v1211, %v1224
        %v1226 = vcombine.low %v1193, %v1209
        %v1227 = vcombine.high %v1193, %v1209
        %v1229 = vunpack.c.l.s4 1934713408
        %v1230 = vunpack.c.0.s8 %v1229
        %v1231 = vlaneseq
        %v1232 = vshrl.u32 %v1231, 7
        %v1233 = vsub.s32 %v1230, %v1232
        %v1234 = vrot.slane %v1226, %v1233
        %v1236 = vunpack.c.l.s4 1934713408
        %v1237 = vunpack.c.0.s8 %v1236
        %v1238 = vlaneseq
        %v1239 = vshrl.u32 %v1238, 7
        %v1240 = vsub.s32 %v1237, %v1239
        %v1241 = vrot.slane %v1227, %v1240
        %v1242 = vcombine.high %v1218, 0.0
        %v1243 = vcombine.high %v1225, 0.0
        %v1244 = vcombine.high %v1234, 0.0
        %v1245 = vcombine.high %v1241, 0.0
        %1247 = vrot.lane.b32.xlu0 %v1174, 16
        %v1248 = vpop.permute.xlu0 %1247
        %1251 = vrot.lane.b32.xlu0 %v1157, 32
        %v1252 = vpop.permute.xlu0 %1251
        %1255 = vrot.lane.b32.xlu0 %v1175, 48
        %v1256 = vpop.permute.xlu0 %1255
        %1259 = vrot.lane.b32.xlu0 %v1166, 64
        %v1260 = vpop.permute.xlu0 %1259
        %1263 = vrot.lane.b32.xlu0 %v1176, 80
        %v1264 = vpop.permute.xlu0 %1263
        %1267 = vrot.lane.b32.xlu0 %v1173, 96
        %v1268 = vpop.permute.xlu0 %1267
        %1271 = vrot.lane.b32.xlu0 %v1177, 112
        %v1272 = vpop.permute.xlu0 %1271
        %1275 = vrot.lane.b32.xlu0 %v1242, 16
        %v1276 = vpop.permute.xlu0 %1275
        %1279 = vrot.lane.b32.xlu0 %v1225, 32
        %v1280 = vpop.permute.xlu0 %1279
        %1283 = vrot.lane.b32.xlu0 %v1243, 48
        %v1284 = vpop.permute.xlu0 %1283
        %1287 = vrot.lane.b32.xlu0 %v1234, 64
        %v1288 = vpop.permute.xlu0 %1287
        %1291 = vrot.lane.b32.xlu0 %v1244, 80
        %v1292 = vpop.permute.xlu0 %1291
        %1295 = vrot.lane.b32.xlu0 %v1241, 96
        %v1296 = vpop.permute.xlu0 %1295
        %1299 = vrot.lane.b32.xlu0 %v1245, 112
        %v1300 = vpop.permute.xlu0 %1299
        %v1302 = vsel %vm577, %v1150, %v1248
        %v1303 = vsel %vm579, %v1302, %v1252
        %v1304 = vsel %vm581, %v1303, %v1256
        %v1305 = vsel %vm583, %v1304, %v1260
        %v1306 = vsel %vm585, %v1305, %v1264
        %v1307 = vsel %vm587, %v1306, %v1268
        %v1308 = vsel %vm589, %v1307, %v1272
        %v1309 = vsel %vm577, %v1218, %v1276
        %v1310 = vsel %vm579, %v1309, %v1280
        %v1311 = vsel %vm581, %v1310, %v1284
        %v1312 = vsel %vm583, %v1311, %v1288
        %v1313 = vsel %vm585, %v1312, %v1292
        %v1314 = vsel %vm587, %v1313, %v1296
        %v1315 = vsel %vm589, %v1314, %v1300
        %v1318 = vrot.slane %v1308, 4
        %v1319 = vrot.slane %v1315, 4
        %1322 = vst [vmem:[#allocation3 + $0x10] sm:$0xf0] %v1318
        %1323 = vst [vmem:[#allocation3 + $0x18] sm:$0xf0] %v1319
        %v1324 = vld [vmem:[#allocation2 + $0x1] sm:$0xff]
        %v1325 = vld [vmem:[#allocation2 + $0x9] sm:$0xff]
        %v1326 = vld [vmem:[#allocation2 + $0x19] sm:$0xff]
        %v1327 = vld [vmem:[#allocation2 + $0x21] sm:$0xff]
        %v1328 = vld [vmem:[#allocation2 + $0x31] sm:$0xff]
        %v1329 = vld [vmem:[#allocation2 + $0x39] sm:$0xff]
        %v1330 = vld [vmem:[#allocation2 + $0x49] sm:$0xff]
        %v1331 = vld [vmem:[#allocation2 + $0x51] sm:$0xff]
        %1340 = vrot.lane.b32.xlu0 %v1324, 127
        %v1341 = vpop.permute.xlu0 %1340
        %1342 = vrot.lane.b32.xlu0 %v1325, 127
        %v1343 = vpop.permute.xlu0 %1342
        %1344 = vrot.lane.b32.xlu0 %v1326, 127
        %v1345 = vpop.permute.xlu0 %1344
        %1346 = vrot.lane.b32.xlu0 %v1327, 127
        %v1347 = vpop.permute.xlu0 %1346
        %1348 = vrot.lane.b32.xlu0 %v1328, 127
        %v1349 = vpop.permute.xlu0 %1348
        %1350 = vrot.lane.b32.xlu0 %v1329, 127
        %v1351 = vpop.permute.xlu0 %1350
        %1352 = vrot.lane.b32.xlu0 %v1330, 127
        %v1353 = vpop.permute.xlu0 %1352
        %1354 = vrot.lane.b32.xlu0 %v1331, 127
        %v1355 = vpop.permute.xlu0 %1354
        %v1364 = vcombine.low %v1341, %v1349
        %v1365 = vcombine.high %v1341, %v1349
        %v1367 = vunpack.c.l.s4 1983009808
        %v1368 = vunpack.c.0.s8 %v1367
        %v1369 = vlaneseq
        %v1370 = vshrl.u32 %v1369, 7
        %v1371 = vsub.s32 %v1368, %v1370
        %v1372 = vrot.slane %v1364, %v1371
        %v1374 = vunpack.c.l.s4 1983009808
        %v1375 = vunpack.c.0.s8 %v1374
        %v1376 = vlaneseq
        %v1377 = vshrl.u32 %v1376, 7
        %v1378 = vsub.s32 %v1375, %v1377
        %v1379 = vrot.slane %v1365, %v1378
        %v1380 = vcombine.low %v1345, %v1353
        %v1381 = vcombine.high %v1345, %v1353
        %v1383 = vunpack.c.l.s4 1983009808
        %v1384 = vunpack.c.0.s8 %v1383
        %v1385 = vlaneseq
        %v1386 = vshrl.u32 %v1385, 7
        %v1387 = vsub.s32 %v1384, %v1386
        %v1388 = vrot.slane %v1380, %v1387
        %v1390 = vunpack.c.l.s4 1983009808
        %v1391 = vunpack.c.0.s8 %v1390
        %v1392 = vlaneseq
        %v1393 = vshrl.u32 %v1392, 7
        %v1394 = vsub.s32 %v1391, %v1393
        %v1395 = vrot.slane %v1381, %v1394
        %v1396 = vcombine.low %v1372, %v1388
        %v1397 = vcombine.high %v1372, %v1388
        %v1399 = vunpack.c.l.s4 1934713408
        %v1400 = vunpack.c.0.s8 %v1399
        %v1401 = vlaneseq
        %v1402 = vshrl.u32 %v1401, 7
        %v1403 = vsub.s32 %v1400, %v1402
        %v1404 = vrot.slane %v1396, %v1403
        %v1406 = vunpack.c.l.s4 1934713408
        %v1407 = vunpack.c.0.s8 %v1406
        %v1408 = vlaneseq
        %v1409 = vshrl.u32 %v1408, 7
        %v1410 = vsub.s32 %v1407, %v1409
        %v1411 = vrot.slane %v1397, %v1410
        %v1412 = vcombine.low %v1379, %v1395
        %v1413 = vcombine.high %v1379, %v1395
        %v1415 = vunpack.c.l.s4 1934713408
        %v1416 = vunpack.c.0.s8 %v1415
        %v1417 = vlaneseq
        %v1418 = vshrl.u32 %v1417, 7
        %v1419 = vsub.s32 %v1416, %v1418
        %v1420 = vrot.slane %v1412, %v1419
        %v1422 = vunpack.c.l.s4 1934713408
        %v1423 = vunpack.c.0.s8 %v1422
        %v1424 = vlaneseq
        %v1425 = vshrl.u32 %v1424, 7
        %v1426 = vsub.s32 %v1423, %v1425
        %v1427 = vrot.slane %v1413, %v1426
        %v1428 = vcombine.high %v1404, 0.0
        %v1429 = vcombine.high %v1411, 0.0
        %v1430 = vcombine.high %v1420, 0.0
        %v1431 = vcombine.high %v1427, 0.0
        %v1432 = vcombine.low %v1343, %v1351
        %v1433 = vcombine.high %v1343, %v1351
        %v1435 = vunpack.c.l.s4 1983009808
        %v1436 = vunpack.c.0.s8 %v1435
        %v1437 = vlaneseq
        %v1438 = vshrl.u32 %v1437, 7
        %v1439 = vsub.s32 %v1436, %v1438
        %v1440 = vrot.slane %v1432, %v1439
        %v1442 = vunpack.c.l.s4 1983009808
        %v1443 = vunpack.c.0.s8 %v1442
        %v1444 = vlaneseq
        %v1445 = vshrl.u32 %v1444, 7
        %v1446 = vsub.s32 %v1443, %v1445
        %v1447 = vrot.slane %v1433, %v1446
        %v1448 = vcombine.low %v1347, %v1355
        %v1449 = vcombine.high %v1347, %v1355
        %v1451 = vunpack.c.l.s4 1983009808
        %v1452 = vunpack.c.0.s8 %v1451
        %v1453 = vlaneseq
        %v1454 = vshrl.u32 %v1453, 7
        %v1455 = vsub.s32 %v1452, %v1454
        %v1456 = vrot.slane %v1448, %v1455
        %v1458 = vunpack.c.l.s4 1983009808
        %v1459 = vunpack.c.0.s8 %v1458
        %v1460 = vlaneseq
        %v1461 = vshrl.u32 %v1460, 7
        %v1462 = vsub.s32 %v1459, %v1461
        %v1463 = vrot.slane %v1449, %v1462
        %v1464 = vcombine.low %v1440, %v1456
        %v1465 = vcombine.high %v1440, %v1456
        %v1467 = vunpack.c.l.s4 1934713408
        %v1468 = vunpack.c.0.s8 %v1467
        %v1469 = vlaneseq
        %v1470 = vshrl.u32 %v1469, 7
        %v1471 = vsub.s32 %v1468, %v1470
        %v1472 = vrot.slane %v1464, %v1471
        %v1474 = vunpack.c.l.s4 1934713408
        %v1475 = vunpack.c.0.s8 %v1474
        %v1476 = vlaneseq
        %v1477 = vshrl.u32 %v1476, 7
        %v1478 = vsub.s32 %v1475, %v1477
        %v1479 = vrot.slane %v1465, %v1478
        %v1480 = vcombine.low %v1447, %v1463
        %v1481 = vcombine.high %v1447, %v1463
        %v1483 = vunpack.c.l.s4 1934713408
        %v1484 = vunpack.c.0.s8 %v1483
        %v1485 = vlaneseq
        %v1486 = vshrl.u32 %v1485, 7
        %v1487 = vsub.s32 %v1484, %v1486
        %v1488 = vrot.slane %v1480, %v1487
        %v1490 = vunpack.c.l.s4 1934713408
        %v1491 = vunpack.c.0.s8 %v1490
        %v1492 = vlaneseq
        %v1493 = vshrl.u32 %v1492, 7
        %v1494 = vsub.s32 %v1491, %v1493
        %v1495 = vrot.slane %v1481, %v1494
        %v1496 = vcombine.high %v1472, 0.0
        %v1497 = vcombine.high %v1479, 0.0
        %v1498 = vcombine.high %v1488, 0.0
        %v1499 = vcombine.high %v1495, 0.0
        %1501 = vrot.lane.b32.xlu0 %v1428, 16
        %v1502 = vpop.permute.xlu0 %1501
        %1505 = vrot.lane.b32.xlu0 %v1411, 32
        %v1506 = vpop.permute.xlu0 %1505
        %1509 = vrot.lane.b32.xlu0 %v1429, 48
        %v1510 = vpop.permute.xlu0 %1509
        %1513 = vrot.lane.b32.xlu0 %v1420, 64
        %v1514 = vpop.permute.xlu0 %1513
        %1517 = vrot.lane.b32.xlu0 %v1430, 80
        %v1518 = vpop.permute.xlu0 %1517
        %1521 = vrot.lane.b32.xlu0 %v1427, 96
        %v1522 = vpop.permute.xlu0 %1521
        %1525 = vrot.lane.b32.xlu0 %v1431, 112
        %v1526 = vpop.permute.xlu0 %1525
        %1529 = vrot.lane.b32.xlu0 %v1496, 16
        %v1530 = vpop.permute.xlu0 %1529
        %1533 = vrot.lane.b32.xlu0 %v1479, 32
        %v1534 = vpop.permute.xlu0 %1533
        %1537 = vrot.lane.b32.xlu0 %v1497, 48
        %v1538 = vpop.permute.xlu0 %1537
        %1541 = vrot.lane.b32.xlu0 %v1488, 64
        %v1542 = vpop.permute.xlu0 %1541
        %1545 = vrot.lane.b32.xlu0 %v1498, 80
        %v1546 = vpop.permute.xlu0 %1545
        %1549 = vrot.lane.b32.xlu0 %v1495, 96
        %v1550 = vpop.permute.xlu0 %1549
        %1553 = vrot.lane.b32.xlu0 %v1499, 112
        %v1554 = vpop.permute.xlu0 %1553
        %v1556 = vsel %vm577, %v1404, %v1502
        %v1557 = vsel %vm579, %v1556, %v1506
        %v1558 = vsel %vm581, %v1557, %v1510
        %v1559 = vsel %vm583, %v1558, %v1514
        %v1560 = vsel %vm585, %v1559, %v1518
        %v1561 = vsel %vm587, %v1560, %v1522
        %v1562 = vsel %vm589, %v1561, %v1526
        %v1563 = vsel %vm577, %v1472, %v1530
        %v1564 = vsel %vm579, %v1563, %v1534
        %v1565 = vsel %vm581, %v1564, %v1538
        %v1566 = vsel %vm583, %v1565, %v1542
        %v1567 = vsel %vm585, %v1566, %v1546
        %v1568 = vsel %vm587, %v1567, %v1550
        %v1569 = vsel %vm589, %v1568, %v1554
        %1570 = vst [vmem:[#allocation3 + $0x20] sm:$0xf] %v1562
        %1571 = vst [vmem:[#allocation3 + $0x28] sm:$0xf] %v1569
        %v1572 = vld [vmem:[#allocation2 + $0x1] sm:$0xff]
        %v1573 = vld [vmem:[#allocation2 + $0x9] sm:$0xff]
        %v1574 = vld [vmem:[#allocation2 + $0x19] sm:$0xff]
        %v1575 = vld [vmem:[#allocation2 + $0x21] sm:$0xff]
        %v1576 = vld [vmem:[#allocation2 + $0x31] sm:$0xff]
        %v1577 = vld [vmem:[#allocation2 + $0x39] sm:$0xff]
        %v1578 = vld [vmem:[#allocation2 + $0x49] sm:$0xff]
        %v1579 = vld [vmem:[#allocation2 + $0x51] sm:$0xff]
        %1588 = vrot.lane.b32.xlu0 %v1572, 126
        %v1589 = vpop.permute.xlu0 %1588
        %1590 = vrot.lane.b32.xlu0 %v1573, 126
        %v1591 = vpop.permute.xlu0 %1590
        %1592 = vrot.lane.b32.xlu0 %v1574, 126
        %v1593 = vpop.permute.xlu0 %1592
        %1594 = vrot.lane.b32.xlu0 %v1575, 126
        %v1595 = vpop.permute.xlu0 %1594
        %1596 = vrot.lane.b32.xlu0 %v1576, 126
        %v1597 = vpop.permute.xlu0 %1596
        %1598 = vrot.lane.b32.xlu0 %v1577, 126
        %v1599 = vpop.permute.xlu0 %1598
        %1600 = vrot.lane.b32.xlu0 %v1578, 126
        %v1601 = vpop.permute.xlu0 %1600
        %1602 = vrot.lane.b32.xlu0 %v1579, 126
        %v1603 = vpop.permute.xlu0 %1602
        %v1612 = vcombine.low %v1589, %v1597
        %v1613 = vcombine.high %v1589, %v1597
        %v1615 = vunpack.c.l.s4 1983009808
        %v1616 = vunpack.c.0.s8 %v1615
        %v1617 = vlaneseq
        %v1618 = vshrl.u32 %v1617, 7
        %v1619 = vsub.s32 %v1616, %v1618
        %v1620 = vrot.slane %v1612, %v1619
        %v1622 = vunpack.c.l.s4 1983009808
        %v1623 = vunpack.c.0.s8 %v1622
        %v1624 = vlaneseq
        %v1625 = vshrl.u32 %v1624, 7
        %v1626 = vsub.s32 %v1623, %v1625
        %v1627 = vrot.slane %v1613, %v1626
        %v1628 = vcombine.low %v1593, %v1601
        %v1629 = vcombine.high %v1593, %v1601
        %v1631 = vunpack.c.l.s4 1983009808
        %v1632 = vunpack.c.0.s8 %v1631
        %v1633 = vlaneseq
        %v1634 = vshrl.u32 %v1633, 7
        %v1635 = vsub.s32 %v1632, %v1634
        %v1636 = vrot.slane %v1628, %v1635
        %v1638 = vunpack.c.l.s4 1983009808
        %v1639 = vunpack.c.0.s8 %v1638
        %v1640 = vlaneseq
        %v1641 = vshrl.u32 %v1640, 7
        %v1642 = vsub.s32 %v1639, %v1641
        %v1643 = vrot.slane %v1629, %v1642
        %v1644 = vcombine.low %v1620, %v1636
        %v1645 = vcombine.high %v1620, %v1636
        %v1647 = vunpack.c.l.s4 1934713408
        %v1648 = vunpack.c.0.s8 %v1647
        %v1649 = vlaneseq
        %v1650 = vshrl.u32 %v1649, 7
        %v1651 = vsub.s32 %v1648, %v1650
        %v1652 = vrot.slane %v1644, %v1651
        %v1654 = vunpack.c.l.s4 1934713408
        %v1655 = vunpack.c.0.s8 %v1654
        %v1656 = vlaneseq
        %v1657 = vshrl.u32 %v1656, 7
        %v1658 = vsub.s32 %v1655, %v1657
        %v1659 = vrot.slane %v1645, %v1658
        %v1660 = vcombine.low %v1627, %v1643
        %v1661 = vcombine.high %v1627, %v1643
        %v1663 = vunpack.c.l.s4 1934713408
        %v1664 = vunpack.c.0.s8 %v1663
        %v1665 = vlaneseq
        %v1666 = vshrl.u32 %v1665, 7
        %v1667 = vsub.s32 %v1664, %v1666
        %v1668 = vrot.slane %v1660, %v1667
        %v1670 = vunpack.c.l.s4 1934713408
        %v1671 = vunpack.c.0.s8 %v1670
        %v1672 = vlaneseq
        %v1673 = vshrl.u32 %v1672, 7
        %v1674 = vsub.s32 %v1671, %v1673
        %v1675 = vrot.slane %v1661, %v1674
        %v1676 = vcombine.high %v1652, 0.0
        %v1677 = vcombine.high %v1659, 0.0
        %v1678 = vcombine.high %v1668, 0.0
        %v1679 = vcombine.high %v1675, 0.0
        %v1680 = vcombine.low %v1591, %v1599
        %v1681 = vcombine.high %v1591, %v1599
        %v1683 = vunpack.c.l.s4 1983009808
        %v1684 = vunpack.c.0.s8 %v1683
        %v1685 = vlaneseq
        %v1686 = vshrl.u32 %v1685, 7
        %v1687 = vsub.s32 %v1684, %v1686
        %v1688 = vrot.slane %v1680, %v1687
        %v1690 = vunpack.c.l.s4 1983009808
        %v1691 = vunpack.c.0.s8 %v1690
        %v1692 = vlaneseq
        %v1693 = vshrl.u32 %v1692, 7
        %v1694 = vsub.s32 %v1691, %v1693
        %v1695 = vrot.slane %v1681, %v1694
        %v1696 = vcombine.low %v1595, %v1603
        %v1697 = vcombine.high %v1595, %v1603
        %v1699 = vunpack.c.l.s4 1983009808
        %v1700 = vunpack.c.0.s8 %v1699
        %v1701 = vlaneseq
        %v1702 = vshrl.u32 %v1701, 7
        %v1703 = vsub.s32 %v1700, %v1702
        %v1704 = vrot.slane %v1696, %v1703
        %v1706 = vunpack.c.l.s4 1983009808
        %v1707 = vunpack.c.0.s8 %v1706
        %v1708 = vlaneseq
        %v1709 = vshrl.u32 %v1708, 7
        %v1710 = vsub.s32 %v1707, %v1709
        %v1711 = vrot.slane %v1697, %v1710
        %v1712 = vcombine.low %v1688, %v1704
        %v1713 = vcombine.high %v1688, %v1704
        %v1715 = vunpack.c.l.s4 1934713408
        %v1716 = vunpack.c.0.s8 %v1715
        %v1717 = vlaneseq
        %v1718 = vshrl.u32 %v1717, 7
        %v1719 = vsub.s32 %v1716, %v1718
        %v1720 = vrot.slane %v1712, %v1719
        %v1722 = vunpack.c.l.s4 1934713408
        %v1723 = vunpack.c.0.s8 %v1722
        %v1724 = vlaneseq
        %v1725 = vshrl.u32 %v1724, 7
        %v1726 = vsub.s32 %v1723, %v1725
        %v1727 = vrot.slane %v1713, %v1726
        %v1728 = vcombine.low %v1695, %v1711
        %v1729 = vcombine.high %v1695, %v1711
        %v1731 = vunpack.c.l.s4 1934713408
        %v1732 = vunpack.c.0.s8 %v1731
        %v1733 = vlaneseq
        %v1734 = vshrl.u32 %v1733, 7
        %v1735 = vsub.s32 %v1732, %v1734
        %v1736 = vrot.slane %v1728, %v1735
        %v1738 = vunpack.c.l.s4 1934713408
        %v1739 = vunpack.c.0.s8 %v1738
        %v1740 = vlaneseq
        %v1741 = vshrl.u32 %v1740, 7
        %v1742 = vsub.s32 %v1739, %v1741
        %v1743 = vrot.slane %v1729, %v1742
        %v1744 = vcombine.high %v1720, 0.0
        %v1745 = vcombine.high %v1727, 0.0
        %v1746 = vcombine.high %v1736, 0.0
        %v1747 = vcombine.high %v1743, 0.0
        %1749 = vrot.lane.b32.xlu0 %v1676, 16
        %v1750 = vpop.permute.xlu0 %1749
        %1753 = vrot.lane.b32.xlu0 %v1659, 32
        %v1754 = vpop.permute.xlu0 %1753
        %1757 = vrot.lane.b32.xlu0 %v1677, 48
        %v1758 = vpop.permute.xlu0 %1757
        %1761 = vrot.lane.b32.xlu0 %v1668, 64
        %v1762 = vpop.permute.xlu0 %1761
        %1765 = vrot.lane.b32.xlu0 %v1678, 80
        %v1766 = vpop.permute.xlu0 %1765
        %1769 = vrot.lane.b32.xlu0 %v1675, 96
        %v1770 = vpop.permute.xlu0 %1769
        %1773 = vrot.lane.b32.xlu0 %v1679, 112
        %v1774 = vpop.permute.xlu0 %1773
        %1777 = vrot.lane.b32.xlu0 %v1744, 16
        %v1778 = vpop.permute.xlu0 %1777
        %1781 = vrot.lane.b32.xlu0 %v1727, 32
        %v1782 = vpop.permute.xlu0 %1781
        %1785 = vrot.lane.b32.xlu0 %v1745, 48
        %v1786 = vpop.permute.xlu0 %1785
        %1789 = vrot.lane.b32.xlu0 %v1736, 64
        %v1790 = vpop.permute.xlu0 %1789
        %1793 = vrot.lane.b32.xlu0 %v1746, 80
        %v1794 = vpop.permute.xlu0 %1793
        %1797 = vrot.lane.b32.xlu0 %v1743, 96
        %v1798 = vpop.permute.xlu0 %1797
        %1801 = vrot.lane.b32.xlu0 %v1747, 112
        %v1802 = vpop.permute.xlu0 %1801
        %v1804 = vsel %vm577, %v1652, %v1750
        %v1805 = vsel %vm579, %v1804, %v1754
        %v1806 = vsel %vm581, %v1805, %v1758
        %v1807 = vsel %vm583, %v1806, %v1762
        %v1808 = vsel %vm585, %v1807, %v1766
        %v1809 = vsel %vm587, %v1808, %v1770
        %v1810 = vsel %vm589, %v1809, %v1774
        %v1811 = vsel %vm577, %v1720, %v1778
        %v1812 = vsel %vm579, %v1811, %v1782
        %v1813 = vsel %vm581, %v1812, %v1786
        %v1814 = vsel %vm583, %v1813, %v1790
        %v1815 = vsel %vm585, %v1814, %v1794
        %v1816 = vsel %vm587, %v1815, %v1798
        %v1817 = vsel %vm589, %v1816, %v1802
        %v1820 = vrot.slane %v1810, 4
        %v1821 = vrot.slane %v1817, 4
        %1824 = vst [vmem:[#allocation3 + $0x20] sm:$0xf0] %v1820
        %1825 = vst [vmem:[#allocation3 + $0x28] sm:$0xf0] %v1821
        %v1826 = vld [vmem:[#allocation2 + $0x2] sm:$0xff]
        %v1827 = vld [vmem:[#allocation2 + $0xa] sm:$0xff]
        %v1828 = vld [vmem:[#allocation2 + $0x1a] sm:$0xff]
        %v1829 = vld [vmem:[#allocation2 + $0x22] sm:$0xff]
        %v1830 = vld [vmem:[#allocation2 + $0x32] sm:$0xff]
        %v1831 = vld [vmem:[#allocation2 + $0x3a] sm:$0xff]
        %v1832 = vld [vmem:[#allocation2 + $0x4a] sm:$0xff]
        %v1833 = vld [vmem:[#allocation2 + $0x52] sm:$0xff]
        %v1834 = vcombine.low %v1826, %v1830
        %v1835 = vcombine.high %v1826, %v1830
        %v1837 = vunpack.c.l.s4 1983009808
        %v1838 = vunpack.c.0.s8 %v1837
        %v1839 = vlaneseq
        %v1840 = vshrl.u32 %v1839, 7
        %v1841 = vsub.s32 %v1838, %v1840
        %v1842 = vrot.slane %v1834, %v1841
        %v1844 = vunpack.c.l.s4 1983009808
        %v1845 = vunpack.c.0.s8 %v1844
        %v1846 = vlaneseq
        %v1847 = vshrl.u32 %v1846, 7
        %v1848 = vsub.s32 %v1845, %v1847
        %v1849 = vrot.slane %v1835, %v1848
        %v1850 = vcombine.low %v1828, %v1832
        %v1851 = vcombine.high %v1828, %v1832
        %v1853 = vunpack.c.l.s4 1983009808
        %v1854 = vunpack.c.0.s8 %v1853
        %v1855 = vlaneseq
        %v1856 = vshrl.u32 %v1855, 7
        %v1857 = vsub.s32 %v1854, %v1856
        %v1858 = vrot.slane %v1850, %v1857
        %v1860 = vunpack.c.l.s4 1983009808
        %v1861 = vunpack.c.0.s8 %v1860
        %v1862 = vlaneseq
        %v1863 = vshrl.u32 %v1862, 7
        %v1864 = vsub.s32 %v1861, %v1863
        %v1865 = vrot.slane %v1851, %v1864
        %v1866 = vcombine.low %v1842, %v1858
        %v1867 = vcombine.high %v1842, %v1858
        %v1869 = vunpack.c.l.s4 1934713408
        %v1870 = vunpack.c.0.s8 %v1869
        %v1871 = vlaneseq
        %v1872 = vshrl.u32 %v1871, 7
        %v1873 = vsub.s32 %v1870, %v1872
        %v1874 = vrot.slane %v1866, %v1873
        %v1876 = vunpack.c.l.s4 1934713408
        %v1877 = vunpack.c.0.s8 %v1876
        %v1878 = vlaneseq
        %v1879 = vshrl.u32 %v1878, 7
        %v1880 = vsub.s32 %v1877, %v1879
        %v1881 = vrot.slane %v1867, %v1880
        %v1882 = vcombine.low %v1849, %v1865
        %v1883 = vcombine.high %v1849, %v1865
        %v1885 = vunpack.c.l.s4 1934713408
        %v1886 = vunpack.c.0.s8 %v1885
        %v1887 = vlaneseq
        %v1888 = vshrl.u32 %v1887, 7
        %v1889 = vsub.s32 %v1886, %v1888
        %v1890 = vrot.slane %v1882, %v1889
        %v1892 = vunpack.c.l.s4 1934713408
        %v1893 = vunpack.c.0.s8 %v1892
        %v1894 = vlaneseq
        %v1895 = vshrl.u32 %v1894, 7
        %v1896 = vsub.s32 %v1893, %v1895
        %v1897 = vrot.slane %v1883, %v1896
        %v1898 = vcombine.high %v1874, 0.0
        %v1899 = vcombine.high %v1881, 0.0
        %v1900 = vcombine.high %v1890, 0.0
        %v1901 = vcombine.high %v1897, 0.0
        %v1902 = vcombine.low %v1827, %v1831
        %v1903 = vcombine.high %v1827, %v1831
        %v1905 = vunpack.c.l.s4 1983009808
        %v1906 = vunpack.c.0.s8 %v1905
        %v1907 = vlaneseq
        %v1908 = vshrl.u32 %v1907, 7
        %v1909 = vsub.s32 %v1906, %v1908
        %v1910 = vrot.slane %v1902, %v1909
        %v1912 = vunpack.c.l.s4 1983009808
        %v1913 = vunpack.c.0.s8 %v1912
        %v1914 = vlaneseq
        %v1915 = vshrl.u32 %v1914, 7
        %v1916 = vsub.s32 %v1913, %v1915
        %v1917 = vrot.slane %v1903, %v1916
        %v1918 = vcombine.low %v1829, %v1833
        %v1919 = vcombine.high %v1829, %v1833
        %v1921 = vunpack.c.l.s4 1983009808
        %v1922 = vunpack.c.0.s8 %v1921
        %v1923 = vlaneseq
        %v1924 = vshrl.u32 %v1923, 7
        %v1925 = vsub.s32 %v1922, %v1924
        %v1926 = vrot.slane %v1918, %v1925
        %v1928 = vunpack.c.l.s4 1983009808
        %v1929 = vunpack.c.0.s8 %v1928
        %v1930 = vlaneseq
        %v1931 = vshrl.u32 %v1930, 7
        %v1932 = vsub.s32 %v1929, %v1931
        %v1933 = vrot.slane %v1919, %v1932
        %v1934 = vcombine.low %v1910, %v1926
        %v1935 = vcombine.high %v1910, %v1926
        %v1937 = vunpack.c.l.s4 1934713408
        %v1938 = vunpack.c.0.s8 %v1937
        %v1939 = vlaneseq
        %v1940 = vshrl.u32 %v1939, 7
        %v1941 = vsub.s32 %v1938, %v1940
        %v1942 = vrot.slane %v1934, %v1941
        %v1944 = vunpack.c.l.s4 1934713408
        %v1945 = vunpack.c.0.s8 %v1944
        %v1946 = vlaneseq
        %v1947 = vshrl.u32 %v1946, 7
        %v1948 = vsub.s32 %v1945, %v1947
        %v1949 = vrot.slane %v1935, %v1948
        %v1950 = vcombine.low %v1917, %v1933
        %v1951 = vcombine.high %v1917, %v1933
        %v1953 = vunpack.c.l.s4 1934713408
        %v1954 = vunpack.c.0.s8 %v1953
        %v1955 = vlaneseq
        %v1956 = vshrl.u32 %v1955, 7
        %v1957 = vsub.s32 %v1954, %v1956
        %v1958 = vrot.slane %v1950, %v1957
        %v1960 = vunpack.c.l.s4 1934713408
        %v1961 = vunpack.c.0.s8 %v1960
        %v1962 = vlaneseq
        %v1963 = vshrl.u32 %v1962, 7
        %v1964 = vsub.s32 %v1961, %v1963
        %v1965 = vrot.slane %v1951, %v1964
        %v1966 = vcombine.high %v1942, 0.0
        %v1967 = vcombine.high %v1949, 0.0
        %v1968 = vcombine.high %v1958, 0.0
        %v1969 = vcombine.high %v1965, 0.0
        %1971 = vrot.lane.b32.xlu0 %v1898, 16
        %v1972 = vpop.permute.xlu0 %1971
        %1975 = vrot.lane.b32.xlu0 %v1881, 32
        %v1976 = vpop.permute.xlu0 %1975
        %1979 = vrot.lane.b32.xlu0 %v1899, 48
        %v1980 = vpop.permute.xlu0 %1979
        %1983 = vrot.lane.b32.xlu0 %v1890, 64
        %v1984 = vpop.permute.xlu0 %1983
        %1987 = vrot.lane.b32.xlu0 %v1900, 80
        %v1988 = vpop.permute.xlu0 %1987
        %1991 = vrot.lane.b32.xlu0 %v1897, 96
        %v1992 = vpop.permute.xlu0 %1991
        %1995 = vrot.lane.b32.xlu0 %v1901, 112
        %v1996 = vpop.permute.xlu0 %1995
        %1999 = vrot.lane.b32.xlu0 %v1966, 16
        %v2000 = vpop.permute.xlu0 %1999
        %2003 = vrot.lane.b32.xlu0 %v1949, 32
        %v2004 = vpop.permute.xlu0 %2003
        %2007 = vrot.lane.b32.xlu0 %v1967, 48
        %v2008 = vpop.permute.xlu0 %2007
        %2011 = vrot.lane.b32.xlu0 %v1958, 64
        %v2012 = vpop.permute.xlu0 %2011
        %2015 = vrot.lane.b32.xlu0 %v1968, 80
        %v2016 = vpop.permute.xlu0 %2015
        %2019 = vrot.lane.b32.xlu0 %v1965, 96
        %v2020 = vpop.permute.xlu0 %2019
        %2023 = vrot.lane.b32.xlu0 %v1969, 112
        %v2024 = vpop.permute.xlu0 %2023
        %v2026 = vsel %vm577, %v1874, %v1972
        %v2027 = vsel %vm579, %v2026, %v1976
        %v2028 = vsel %vm581, %v2027, %v1980
        %v2029 = vsel %vm583, %v2028, %v1984
        %v2030 = vsel %vm585, %v2029, %v1988
        %v2031 = vsel %vm587, %v2030, %v1992
        %v2032 = vsel %vm589, %v2031, %v1996
        %v2033 = vsel %vm577, %v1942, %v2000
        %v2034 = vsel %vm579, %v2033, %v2004
        %v2035 = vsel %vm581, %v2034, %v2008
        %v2036 = vsel %vm583, %v2035, %v2012
        %v2037 = vsel %vm585, %v2036, %v2016
        %v2038 = vsel %vm587, %v2037, %v2020
        %v2039 = vsel %vm589, %v2038, %v2024
        %2040 = vst [vmem:[#allocation3 + $0x30] sm:$0xf] %v2032
        %2041 = vst [vmem:[#allocation3 + $0x38] sm:$0xf] %v2039
        %v2042 = vld [vmem:[#allocation2 + $0x2] sm:$0xff]
        %v2043 = vld [vmem:[#allocation2 + $0xa] sm:$0xff]
        %v2044 = vld [vmem:[#allocation2 + $0x1a] sm:$0xff]
        %v2045 = vld [vmem:[#allocation2 + $0x22] sm:$0xff]
        %v2046 = vld [vmem:[#allocation2 + $0x32] sm:$0xff]
        %v2047 = vld [vmem:[#allocation2 + $0x3a] sm:$0xff]
        %v2048 = vld [vmem:[#allocation2 + $0x4a] sm:$0xff]
        %v2049 = vld [vmem:[#allocation2 + $0x52] sm:$0xff]
        %2058 = vrot.lane.b32.xlu0 %v2042, 127
        %v2059 = vpop.permute.xlu0 %2058
        %2060 = vrot.lane.b32.xlu0 %v2043, 127
        %v2061 = vpop.permute.xlu0 %2060
        %2062 = vrot.lane.b32.xlu0 %v2044, 127
        %v2063 = vpop.permute.xlu0 %2062
        %2064 = vrot.lane.b32.xlu0 %v2045, 127
        %v2065 = vpop.permute.xlu0 %2064
        %2066 = vrot.lane.b32.xlu0 %v2046, 127
        %v2067 = vpop.permute.xlu0 %2066
        %2068 = vrot.lane.b32.xlu0 %v2047, 127
        %v2069 = vpop.permute.xlu0 %2068
        %2070 = vrot.lane.b32.xlu0 %v2048, 127
        %v2071 = vpop.permute.xlu0 %2070
        %2072 = vrot.lane.b32.xlu0 %v2049, 127
        %v2073 = vpop.permute.xlu0 %2072
        %v2082 = vcombine.low %v2059, %v2067
        %v2083 = vcombine.high %v2059, %v2067
        %v2085 = vunpack.c.l.s4 1983009808
        %v2086 = vunpack.c.0.s8 %v2085
        %v2087 = vlaneseq
        %v2088 = vshrl.u32 %v2087, 7
        %v2089 = vsub.s32 %v2086, %v2088
        %v2090 = vrot.slane %v2082, %v2089
        %v2092 = vunpack.c.l.s4 1983009808
        %v2093 = vunpack.c.0.s8 %v2092
        %v2094 = vlaneseq
        %v2095 = vshrl.u32 %v2094, 7
        %v2096 = vsub.s32 %v2093, %v2095
        %v2097 = vrot.slane %v2083, %v2096
        %v2098 = vcombine.low %v2063, %v2071
        %v2099 = vcombine.high %v2063, %v2071
        %v2101 = vunpack.c.l.s4 1983009808
        %v2102 = vunpack.c.0.s8 %v2101
        %v2103 = vlaneseq
        %v2104 = vshrl.u32 %v2103, 7
        %v2105 = vsub.s32 %v2102, %v2104
        %v2106 = vrot.slane %v2098, %v2105
        %v2108 = vunpack.c.l.s4 1983009808
        %v2109 = vunpack.c.0.s8 %v2108
        %v2110 = vlaneseq
        %v2111 = vshrl.u32 %v2110, 7
        %v2112 = vsub.s32 %v2109, %v2111
        %v2113 = vrot.slane %v2099, %v2112
        %v2114 = vcombine.low %v2090, %v2106
        %v2115 = vcombine.high %v2090, %v2106
        %v2117 = vunpack.c.l.s4 1934713408
        %v2118 = vunpack.c.0.s8 %v2117
        %v2119 = vlaneseq
        %v2120 = vshrl.u32 %v2119, 7
        %v2121 = vsub.s32 %v2118, %v2120
        %v2122 = vrot.slane %v2114, %v2121
        %v2124 = vunpack.c.l.s4 1934713408
        %v2125 = vunpack.c.0.s8 %v2124
        %v2126 = vlaneseq
        %v2127 = vshrl.u32 %v2126, 7
        %v2128 = vsub.s32 %v2125, %v2127
        %v2129 = vrot.slane %v2115, %v2128
        %v2130 = vcombine.low %v2097, %v2113
        %v2131 = vcombine.high %v2097, %v2113
        %v2133 = vunpack.c.l.s4 1934713408
        %v2134 = vunpack.c.0.s8 %v2133
        %v2135 = vlaneseq
        %v2136 = vshrl.u32 %v2135, 7
        %v2137 = vsub.s32 %v2134, %v2136
        %v2138 = vrot.slane %v2130, %v2137
        %v2140 = vunpack.c.l.s4 1934713408
        %v2141 = vunpack.c.0.s8 %v2140
        %v2142 = vlaneseq
        %v2143 = vshrl.u32 %v2142, 7
        %v2144 = vsub.s32 %v2141, %v2143
        %v2145 = vrot.slane %v2131, %v2144
        %v2146 = vcombine.high %v2122, 0.0
        %v2147 = vcombine.high %v2129, 0.0
        %v2148 = vcombine.high %v2138, 0.0
        %v2149 = vcombine.high %v2145, 0.0
        %v2150 = vcombine.low %v2061, %v2069
        %v2151 = vcombine.high %v2061, %v2069
        %v2153 = vunpack.c.l.s4 1983009808
        %v2154 = vunpack.c.0.s8 %v2153
        %v2155 = vlaneseq
        %v2156 = vshrl.u32 %v2155, 7
        %v2157 = vsub.s32 %v2154, %v2156
        %v2158 = vrot.slane %v2150, %v2157
        %v2160 = vunpack.c.l.s4 1983009808
        %v2161 = vunpack.c.0.s8 %v2160
        %v2162 = vlaneseq
        %v2163 = vshrl.u32 %v2162, 7
        %v2164 = vsub.s32 %v2161, %v2163
        %v2165 = vrot.slane %v2151, %v2164
        %v2166 = vcombine.low %v2065, %v2073
        %v2167 = vcombine.high %v2065, %v2073
        %v2169 = vunpack.c.l.s4 1983009808
        %v2170 = vunpack.c.0.s8 %v2169
        %v2171 = vlaneseq
        %v2172 = vshrl.u32 %v2171, 7
        %v2173 = vsub.s32 %v2170, %v2172
        %v2174 = vrot.slane %v2166, %v2173
        %v2176 = vunpack.c.l.s4 1983009808
        %v2177 = vunpack.c.0.s8 %v2176
        %v2178 = vlaneseq
        %v2179 = vshrl.u32 %v2178, 7
        %v2180 = vsub.s32 %v2177, %v2179
        %v2181 = vrot.slane %v2167, %v2180
        %v2182 = vcombine.low %v2158, %v2174
        %v2183 = vcombine.high %v2158, %v2174
        %v2185 = vunpack.c.l.s4 1934713408
        %v2186 = vunpack.c.0.s8 %v2185
        %v2187 = vlaneseq
        %v2188 = vshrl.u32 %v2187, 7
        %v2189 = vsub.s32 %v2186, %v2188
        %v2190 = vrot.slane %v2182, %v2189
        %v2192 = vunpack.c.l.s4 1934713408
        %v2193 = vunpack.c.0.s8 %v2192
        %v2194 = vlaneseq
        %v2195 = vshrl.u32 %v2194, 7
        %v2196 = vsub.s32 %v2193, %v2195
        %v2197 = vrot.slane %v2183, %v2196
        %v2198 = vcombine.low %v2165, %v2181
        %v2199 = vcombine.high %v2165, %v2181
        %v2201 = vunpack.c.l.s4 1934713408
        %v2202 = vunpack.c.0.s8 %v2201
        %v2203 = vlaneseq
        %v2204 = vshrl.u32 %v2203, 7
        %v2205 = vsub.s32 %v2202, %v2204
        %v2206 = vrot.slane %v2198, %v2205
        %v2208 = vunpack.c.l.s4 1934713408
        %v2209 = vunpack.c.0.s8 %v2208
        %v2210 = vlaneseq
        %v2211 = vshrl.u32 %v2210, 7
        %v2212 = vsub.s32 %v2209, %v2211
        %v2213 = vrot.slane %v2199, %v2212
        %v2214 = vcombine.high %v2190, 0.0
        %v2215 = vcombine.high %v2197, 0.0
        %v2216 = vcombine.high %v2206, 0.0
        %v2217 = vcombine.high %v2213, 0.0
        %2219 = vrot.lane.b32.xlu0 %v2146, 16
        %v2220 = vpop.permute.xlu0 %2219
        %2223 = vrot.lane.b32.xlu0 %v2129, 32
        %v2224 = vpop.permute.xlu0 %2223
        %2227 = vrot.lane.b32.xlu0 %v2147, 48
        %v2228 = vpop.permute.xlu0 %2227
        %2231 = vrot.lane.b32.xlu0 %v2138, 64
        %v2232 = vpop.permute.xlu0 %2231
        %2235 = vrot.lane.b32.xlu0 %v2148, 80
        %v2236 = vpop.permute.xlu0 %2235
        %2239 = vrot.lane.b32.xlu0 %v2145, 96
        %v2240 = vpop.permute.xlu0 %2239
        %2243 = vrot.lane.b32.xlu0 %v2149, 112
        %v2244 = vpop.permute.xlu0 %2243
        %2247 = vrot.lane.b32.xlu0 %v2214, 16
        %v2248 = vpop.permute.xlu0 %2247
        %2251 = vrot.lane.b32.xlu0 %v2197, 32
        %v2252 = vpop.permute.xlu0 %2251
        %2255 = vrot.lane.b32.xlu0 %v2215, 48
        %v2256 = vpop.permute.xlu0 %2255
        %2259 = vrot.lane.b32.xlu0 %v2206, 64
        %v2260 = vpop.permute.xlu0 %2259
        %2263 = vrot.lane.b32.xlu0 %v2216, 80
        %v2264 = vpop.permute.xlu0 %2263
        %2267 = vrot.lane.b32.xlu0 %v2213, 96
        %v2268 = vpop.permute.xlu0 %2267
        %2271 = vrot.lane.b32.xlu0 %v2217, 112
        %v2272 = vpop.permute.xlu0 %2271
        %v2274 = vsel %vm577, %v2122, %v2220
        %v2275 = vsel %vm579, %v2274, %v2224
        %v2276 = vsel %vm581, %v2275, %v2228
        %v2277 = vsel %vm583, %v2276, %v2232
        %v2278 = vsel %vm585, %v2277, %v2236
        %v2279 = vsel %vm587, %v2278, %v2240
        %v2280 = vsel %vm589, %v2279, %v2244
        %v2281 = vsel %vm577, %v2190, %v2248
        %v2282 = vsel %vm579, %v2281, %v2252
        %v2283 = vsel %vm581, %v2282, %v2256
        %v2284 = vsel %vm583, %v2283, %v2260
        %v2285 = vsel %vm585, %v2284, %v2264
        %v2286 = vsel %vm587, %v2285, %v2268
        %v2287 = vsel %vm589, %v2286, %v2272
        %v2290 = vrot.slane %v2280, 4
        %v2291 = vrot.slane %v2287, 4
        %2294 = vst [vmem:[#allocation3 + $0x30] sm:$0xf0] %v2290
        %2295 = vst [vmem:[#allocation3 + $0x38] sm:$0xf0] %v2291
        %v2296 = vld [vmem:[#allocation2 + $0x2] sm:$0xff]
        %v2297 = vld [vmem:[#allocation2 + $0xa] sm:$0xff]
        %v2298 = vld [vmem:[#allocation2 + $0x1a] sm:$0xff]
        %v2299 = vld [vmem:[#allocation2 + $0x22] sm:$0xff]
        %v2300 = vld [vmem:[#allocation2 + $0x32] sm:$0xff]
        %v2301 = vld [vmem:[#allocation2 + $0x3a] sm:$0xff]
        %v2302 = vld [vmem:[#allocation2 + $0x4a] sm:$0xff]
        %v2303 = vld [vmem:[#allocation2 + $0x52] sm:$0xff]
        %2312 = vrot.lane.b32.xlu0 %v2296, 126
        %v2313 = vpop.permute.xlu0 %2312
        %2314 = vrot.lane.b32.xlu0 %v2297, 126
        %v2315 = vpop.permute.xlu0 %2314
        %2316 = vrot.lane.b32.xlu0 %v2298, 126
        %v2317 = vpop.permute.xlu0 %2316
        %2318 = vrot.lane.b32.xlu0 %v2299, 126
        %v2319 = vpop.permute.xlu0 %2318
        %2320 = vrot.lane.b32.xlu0 %v2300, 126
        %v2321 = vpop.permute.xlu0 %2320
        %2322 = vrot.lane.b32.xlu0 %v2301, 126
        %v2323 = vpop.permute.xlu0 %2322
        %2324 = vrot.lane.b32.xlu0 %v2302, 126
        %v2325 = vpop.permute.xlu0 %2324
        %2326 = vrot.lane.b32.xlu0 %v2303, 126
        %v2327 = vpop.permute.xlu0 %2326
        %v2336 = vcombine.low %v2313, %v2321
        %v2337 = vcombine.high %v2313, %v2321
        %v2339 = vunpack.c.l.s4 1983009808
        %v2340 = vunpack.c.0.s8 %v2339
        %v2341 = vlaneseq
        %v2342 = vshrl.u32 %v2341, 7
        %v2343 = vsub.s32 %v2340, %v2342
        %v2344 = vrot.slane %v2336, %v2343
        %v2346 = vunpack.c.l.s4 1983009808
        %v2347 = vunpack.c.0.s8 %v2346
        %v2348 = vlaneseq
        %v2349 = vshrl.u32 %v2348, 7
        %v2350 = vsub.s32 %v2347, %v2349
        %v2351 = vrot.slane %v2337, %v2350
        %v2352 = vcombine.low %v2317, %v2325
        %v2353 = vcombine.high %v2317, %v2325
        %v2355 = vunpack.c.l.s4 1983009808
        %v2356 = vunpack.c.0.s8 %v2355
        %v2357 = vlaneseq
        %v2358 = vshrl.u32 %v2357, 7
        %v2359 = vsub.s32 %v2356, %v2358
        %v2360 = vrot.slane %v2352, %v2359
        %v2362 = vunpack.c.l.s4 1983009808
        %v2363 = vunpack.c.0.s8 %v2362
        %v2364 = vlaneseq
        %v2365 = vshrl.u32 %v2364, 7
        %v2366 = vsub.s32 %v2363, %v2365
        %v2367 = vrot.slane %v2353, %v2366
        %v2368 = vcombine.low %v2344, %v2360
        %v2369 = vcombine.high %v2344, %v2360
        %v2371 = vunpack.c.l.s4 1934713408
        %v2372 = vunpack.c.0.s8 %v2371
        %v2373 = vlaneseq
        %v2374 = vshrl.u32 %v2373, 7
        %v2375 = vsub.s32 %v2372, %v2374
        %v2376 = vrot.slane %v2368, %v2375
        %v2378 = vunpack.c.l.s4 1934713408
        %v2379 = vunpack.c.0.s8 %v2378
        %v2380 = vlaneseq
        %v2381 = vshrl.u32 %v2380, 7
        %v2382 = vsub.s32 %v2379, %v2381
        %v2383 = vrot.slane %v2369, %v2382
        %v2384 = vcombine.low %v2351, %v2367
        %v2385 = vcombine.high %v2351, %v2367
        %v2387 = vunpack.c.l.s4 1934713408
        %v2388 = vunpack.c.0.s8 %v2387
        %v2389 = vlaneseq
        %v2390 = vshrl.u32 %v2389, 7
        %v2391 = vsub.s32 %v2388, %v2390
        %v2392 = vrot.slane %v2384, %v2391
        %v2394 = vunpack.c.l.s4 1934713408
        %v2395 = vunpack.c.0.s8 %v2394
        %v2396 = vlaneseq
        %v2397 = vshrl.u32 %v2396, 7
        %v2398 = vsub.s32 %v2395, %v2397
        %v2399 = vrot.slane %v2385, %v2398
        %v2400 = vcombine.high %v2376, 0.0
        %v2401 = vcombine.high %v2383, 0.0
        %v2402 = vcombine.high %v2392, 0.0
        %v2403 = vcombine.high %v2399, 0.0
        %v2404 = vcombine.low %v2315, %v2323
        %v2405 = vcombine.high %v2315, %v2323
        %v2407 = vunpack.c.l.s4 1983009808
        %v2408 = vunpack.c.0.s8 %v2407
        %v2409 = vlaneseq
        %v2410 = vshrl.u32 %v2409, 7
        %v2411 = vsub.s32 %v2408, %v2410
        %v2412 = vrot.slane %v2404, %v2411
        %v2414 = vunpack.c.l.s4 1983009808
        %v2415 = vunpack.c.0.s8 %v2414
        %v2416 = vlaneseq
        %v2417 = vshrl.u32 %v2416, 7
        %v2418 = vsub.s32 %v2415, %v2417
        %v2419 = vrot.slane %v2405, %v2418
        %v2420 = vcombine.low %v2319, %v2327
        %v2421 = vcombine.high %v2319, %v2327
        %v2423 = vunpack.c.l.s4 1983009808
        %v2424 = vunpack.c.0.s8 %v2423
        %v2425 = vlaneseq
        %v2426 = vshrl.u32 %v2425, 7
        %v2427 = vsub.s32 %v2424, %v2426
        %v2428 = vrot.slane %v2420, %v2427
        %v2430 = vunpack.c.l.s4 1983009808
        %v2431 = vunpack.c.0.s8 %v2430
        %v2432 = vlaneseq
        %v2433 = vshrl.u32 %v2432, 7
        %v2434 = vsub.s32 %v2431, %v2433
        %v2435 = vrot.slane %v2421, %v2434
        %v2436 = vcombine.low %v2412, %v2428
        %v2437 = vcombine.high %v2412, %v2428
        %v2439 = vunpack.c.l.s4 1934713408
        %v2440 = vunpack.c.0.s8 %v2439
        %v2441 = vlaneseq
        %v2442 = vshrl.u32 %v2441, 7
        %v2443 = vsub.s32 %v2440, %v2442
        %v2444 = vrot.slane %v2436, %v2443
        %v2446 = vunpack.c.l.s4 1934713408
        %v2447 = vunpack.c.0.s8 %v2446
        %v2448 = vlaneseq
        %v2449 = vshrl.u32 %v2448, 7
        %v2450 = vsub.s32 %v2447, %v2449
        %v2451 = vrot.slane %v2437, %v2450
        %v2452 = vcombine.low %v2419, %v2435
        %v2453 = vcombine.high %v2419, %v2435
        %v2455 = vunpack.c.l.s4 1934713408
        %v2456 = vunpack.c.0.s8 %v2455
        %v2457 = vlaneseq
        %v2458 = vshrl.u32 %v2457, 7
        %v2459 = vsub.s32 %v2456, %v2458
        %v2460 = vrot.slane %v2452, %v2459
        %v2462 = vunpack.c.l.s4 1934713408
        %v2463 = vunpack.c.0.s8 %v2462
        %v2464 = vlaneseq
        %v2465 = vshrl.u32 %v2464, 7
        %v2466 = vsub.s32 %v2463, %v2465
        %v2467 = vrot.slane %v2453, %v2466
        %v2468 = vcombine.high %v2444, 0.0
        %v2469 = vcombine.high %v2451, 0.0
        %v2470 = vcombine.high %v2460, 0.0
        %v2471 = vcombine.high %v2467, 0.0
        %2473 = vrot.lane.b32.xlu0 %v2400, 16
        %v2474 = vpop.permute.xlu0 %2473
        %2477 = vrot.lane.b32.xlu0 %v2383, 32
        %v2478 = vpop.permute.xlu0 %2477
        %2481 = vrot.lane.b32.xlu0 %v2401, 48
        %v2482 = vpop.permute.xlu0 %2481
        %2485 = vrot.lane.b32.xlu0 %v2392, 64
        %v2486 = vpop.permute.xlu0 %2485
        %2489 = vrot.lane.b32.xlu0 %v2402, 80
        %v2490 = vpop.permute.xlu0 %2489
        %2493 = vrot.lane.b32.xlu0 %v2399, 96
        %v2494 = vpop.permute.xlu0 %2493
        %2497 = vrot.lane.b32.xlu0 %v2403, 112
        %v2498 = vpop.permute.xlu0 %2497
        %2501 = vrot.lane.b32.xlu0 %v2468, 16
        %v2502 = vpop.permute.xlu0 %2501
        %2505 = vrot.lane.b32.xlu0 %v2451, 32
        %v2506 = vpop.permute.xlu0 %2505
        %2509 = vrot.lane.b32.xlu0 %v2469, 48
        %v2510 = vpop.permute.xlu0 %2509
        %2513 = vrot.lane.b32.xlu0 %v2460, 64
        %v2514 = vpop.permute.xlu0 %2513
        %2517 = vrot.lane.b32.xlu0 %v2470, 80
        %v2518 = vpop.permute.xlu0 %2517
        %2521 = vrot.lane.b32.xlu0 %v2467, 96
        %v2522 = vpop.permute.xlu0 %2521
        %2525 = vrot.lane.b32.xlu0 %v2471, 112
        %v2526 = vpop.permute.xlu0 %2525
        %v2528 = vsel %vm577, %v2376, %v2474
        %v2529 = vsel %vm579, %v2528, %v2478
        %v2530 = vsel %vm581, %v2529, %v2482
        %v2531 = vsel %vm583, %v2530, %v2486
        %v2532 = vsel %vm585, %v2531, %v2490
        %v2533 = vsel %vm587, %v2532, %v2494
        %v2534 = vsel %vm589, %v2533, %v2498
        %v2535 = vsel %vm577, %v2444, %v2502
        %v2536 = vsel %vm579, %v2535, %v2506
        %v2537 = vsel %vm581, %v2536, %v2510
        %v2538 = vsel %vm583, %v2537, %v2514
        %v2539 = vsel %vm585, %v2538, %v2518
        %v2540 = vsel %vm587, %v2539, %v2522
        %v2541 = vsel %vm589, %v2540, %v2526
        %2542 = vst [vmem:[#allocation3 + $0x40] sm:$0xf] %v2534
        %2543 = vst [vmem:[#allocation3 + $0x48] sm:$0xf] %v2541
        %v2544 = vld [vmem:[%s3] sm:$0xff]
        %v2545 = vld [vmem:[%s3 + $0x8] sm:$0x3f]
        %v2546 = vld [vmem:[#allocation3] sm:$0xff]
        %v2547 = vld [vmem:[#allocation3 + $0x8] sm:$0xff]
        %v2548 = vld [vmem:[#allocation3 + $0x10] sm:$0xff]
        %v2549 = vld [vmem:[#allocation3 + $0x18] sm:$0xff]
        %v2550 = vld [vmem:[#allocation3 + $0x20] sm:$0xff]
        %v2551 = vld [vmem:[#allocation3 + $0x28] sm:$0xff]
        %v2552 = vld [vmem:[#allocation3 + $0x30] sm:$0xff]
        %v2553 = vld [vmem:[#allocation3 + $0x38] sm:$0xff]
        %v2554 = vld [vmem:[#allocation3 + $0x40] sm:$0xf]
        %v2555 = vld [vmem:[#allocation3 + $0x48] sm:$0xf]
        %vm2556 = vcmask 293888
        %v2558 = vsel %vm2556, %v2544, 0
        %v2561 = vsel %vm2556, %v2545, 0
        %vm2563 = vcmask 1043456
        %v2565 = vsel %vm2563, %v2554, 0
        %v2568 = vsel %vm2563, %v2555, 0
        %2570 = vmatprep.subr.mxu0 %v2547
        %2571 = vmatpush1.msra.mxu0 %v2546
        %2572 = vmatprep.subr.mxu0 %v2549
        %2573 = vmatpush1.msra.mxu0 %v2548
        %2574 = vmatprep.subr.mxu0 %v2551
        %2575 = vmatpush1.msra.mxu0 %v2550
        %2576 = vmatprep.subr.mxu0 %v2553
        %2577 = vmatpush1.msra.mxu0 %v2552
        %2578 = vmatprep.subr.mxu0 %v2568
        %2579 = vmatpush1.msra.mxu0 %v2565
        %2580 = vmatprep.subr.mxu0 0.0
        %2581 = vmatpush1.msra.mxu0 0.0
        %2582 = vmatprep.subr.mxu0 0.0
        %2583 = vmatpush1.msra.mxu0 0.0
        %2584 = vmatprep.subr.mxu0 0.0
        %2585 = vmatpush1.msra.mxu0 0.0
        %2586 = vmatprep.subr.mxu0 0.0
        %2587 = vmatpush1.msra.mxu0 0.0
        %2588 = vmatprep.subr.mxu0 0.0
        %2589 = vmatpush1.msra.mxu0 0.0
        %2590 = vmatprep.subr.mxu0 0.0
        %2591 = vmatpush1.msra.mxu0 0.0
        %2592 = vmatprep.subr.mxu0 0.0
        %2593 = vmatpush1.msra.mxu0 0.0
        %2594 = vmatprep.subr.mxu0 0.0
        %2595 = vmatpush1.msra.mxu0 0.0
        %2596 = vmatprep.subr.mxu0 0.0
        %2597 = vmatpush1.msra.mxu0 0.0
        %2598 = vmatprep.subr.mxu0 0.0
        %2599 = vmatpush1.msra.mxu0 0.0
        %2600 = vmatprep.subr.mxu0 0.0
        %2601 = vmatpush1.msra.mxu0 0.0
        %2602 = vmatprep.subr.mxu0 0.0
        %2603 = vmatpush1.msra.mxu0 0.0
        %2604 = vmatprep.subr.mxu0 0.0
        %2605 = vmatpush1.msra.mxu0 0.0
        %2606 = vmatprep.subr.mxu0 0.0
        %2607 = vmatpush1.msra.mxu0 0.0
        %2608 = vmatprep.subr.mxu0 0.0
        %2609 = vmatpush1.msra.mxu0 0.0
        %2610 = vmatprep.subr.mxu0 0.0
        %2611 = vmatpush1.msra.mxu0 0.0
        %2612 = vmatprep.subr.mxu0 0.0
        %2613 = vmatpush1.msra.mxu0 0.0
        %2614 = vmatprep.subr.mxu0 0.0
        %2615 = vmatpush1.msra.mxu0 0.0
        %2616 = vmatprep.subr.mxu0 0.0
        %2617 = vmatpush1.msra.mxu0 0.0
        %2618 = vmatprep.subr.mxu0 0.0
        %2619 = vmatpush1.msra.mxu0 0.0
        %2620 = vmatprep.subr.mxu0 0.0
        %2621 = vmatpush1.msra.mxu0 0.0
        %2622 = vmatprep.subr.mxu0 0.0
        %2623 = vmatpush1.msra.mxu0 0.0
        %2624 = vmatprep.subr.mxu0 0.0
        %2625 = vmatpush1.msra.mxu0 0.0
        %2626 = vmatprep.subr.mxu0 0.0
        %2627 = vmatpush1.msra.mxu0 0.0
        %2628 = vmatprep.subr.mxu0 0.0
        %2629 = vmatpush1.msra.mxu0 0.0
        %2630 = vmatprep.subr.mxu0 0.0
        %2631 = vmatpush1.msra.mxu0 0.0
        %2632 = vmatprep.subr.mxu0 0.0
        %2633 = vmatpush1.msra.mxu0 0.0
        %2634 = vmatprep.mubr.f32.mxu0 0.0
        %2635 = vmatmul.mubr.f32.gmra.mrb[0].mxu0 %v2558
        %v2636 = vpop.f32.mrb[0].mxu0
        %v2637 = vadd.f32 0.0, %v2636
        %v2638 = vpop.f32.mrb[0].mxu0
        %v2639 = vadd.f32 0.0, %v2638
        %2640 = vmatprep.mubr.f32.mxu0 0.0
        %2641 = vmatmul.mubr.f32.gmra.mrb[0].mxu0 %v2561
        %v2642 = vpop.f32.mrb[0].mxu0
        %v2643 = vadd.f32 0.0, %v2642
        %v2644 = vpop.f32.mrb[0].mxu0
        %v2645 = vadd.f32 0.0, %v2644
        %2646 = vdwg.mxu0
        %2647 = vst [vmem:[%s217] sm:$0xff] %v2637
        %2648 = vst [vmem:[%s217 + $0x8] sm:$0xff] %v2639
        %2649 = vst [vmem:[%s217 + $0x10] sm:$0x3f] %v2643
        %2650 = vst [vmem:[%s217 + $0x18] sm:$0x3f] %v2645
        %p2651 = scmp.lt.s32.totalorder %s18, 1
        %s2652 = scalar_select %p2651, %s18, 1
        %s2653 = smul.addr %s2652, 4
        %s2654 = smul.addr %s2653, 8
        %s2655 = scalar_lea.vmem %s4, %s2654
        // Predicated region
        $region41: #{tpu_custom_call.1} parent=35 // pred_check
          %p2656 = pneg %p125
        $region42: #{tpu_custom_call.1} parent=35 // pred_check_branch
          %2658 = sbr.rel (%p2656) target = $region44
        $region43: #{tpu_custom_call.1} parent=35 // pred_region
          _
        $region44: #{tpu_custom_call.1} parent=35 // pred_fallthru
          _
      $region36: #{tpu_custom_call.1} parent=5 // pred_fallthru
        _
      %p2659 = scmp.le.s32.totalorder 2, %s13
      // Predicated region
      $region45: #{tpu_custom_call.1} parent=5 // pred_check
        %p2660 = pneg %p2659
      $region46: #{tpu_custom_call.1} parent=5 // pred_check_branch
        %2662 = sbr.rel (%p2660) target = $region48
      $region47: #{tpu_custom_call.1} parent=5 // pred_region
        %s2663 = ssub.s32 %s13, 2
        // Predicated region
        $region49: #{tpu_custom_call.1} parent=47 // pred_check
          %p2664 = pneg %p131
        $region50: #{tpu_custom_call.1} parent=47 // pred_check_branch
          %2666 = sbr.rel (%p2664) target = $region52
        $region51: #{tpu_custom_call.1} parent=47 // pred_region
          %p2667 = scmp.lt.s32.totalorder %s19, 1
          %s2668 = scalar_select %p2667, %s19, 1
          %s2669 = smul.addr %s2668, 4
          %s2670 = smul.addr %s2669, 8
          %s2671 = scalar_lea.vmem %s4, %s2670
        $region52: #{tpu_custom_call.1} parent=47 // pred_fallthru
          _
      $region48: #{tpu_custom_call.1} parent=5 // pred_fallthru
        _
    $region6: #{tpu_custom_call.1} parent=1 // loop_footer
      %s17 = sadd.s32 1, %s13
    $region7: #{tpu_custom_call.1} parent=1 // loop_footer_branch
      %12 = sbr.rel target = $region3
    $region8: #{tpu_custom_call.1} parent=1 // loop_exit
      _
    %2672 = vsyncpa [#allocation5], 1
    %s2673 = scalar_lea.sflag [#allocation5], 1
    %2674 = vsyncpa %s2673, 1

</llo_original>
